<compile_context>
chip_gen: v7x
topology: tpu7x:2x2x1
jax: 0.10.0
libtpu: 0.0.40
codegen_flags: <defaults>
</compile_context>

<pallas_src>
import functools

import jax
import jax.numpy as jnp
from jax.experimental import pallas as pl
from jax.experimental.pallas import tpu as pltpu


def _mhsa_kernel(x_ref, wqkv_ref, bqkv_ref, wo_ref, bo_ref, o_ref,
                 qh_s, kh_s, vh_s, vals_s, *, num_heads, head_dim, q_tile,
                 softmax_bf16):
    """One (batch element, query tile) grid step."""
    H, D = num_heads, head_dim
    E = H * D
    S = x_ref.shape[1]

    # --- K/V projection + head-major staging: ONCE per batch element -------
    # (qi axis is "arbitrary"; kh_s/vh_s persist across the q-tile steps.)
    @pl.when(pl.program_id(1) == 0)
    def _project_and_stage_kv():
        x = x_ref[0]                                            # (S, E) bf16
        kv = jnp.dot(x, wqkv_ref[:, E:],
                     preferred_element_type=jnp.float32) + bqkv_ref[0, E:]
        kvb = kv.astype(jnp.bfloat16)                           # (S, 2E)
        # Data movement only (static column-block slices). NOTE(v5e): these
        # unrolled stores are store-slot heavy for large H; fine for H<=16.
        for h in range(H):
            lo = h * D
            kh_s[h] = kvb[:, lo:lo + D]
            vh_s[h] = kvb[:, E + lo:E + lo + D]

    # --- Q projection for this query tile (1/sqrt(D) pre-folded into W/b) --
    row0 = pl.multiple_of(pl.program_id(1) * q_tile, q_tile)
    xq = x_ref[0, pl.ds(row0, q_tile), :]                       # (TQ, E) bf16
    q = jnp.dot(xq, wqkv_ref[:, :E],
                preferred_element_type=jnp.float32) + bqkv_ref[0, :E]
    qb = q.astype(jnp.bfloat16)                                 # cast once
    for h in range(H):
        qh_s[h] = qb[:, h * D:(h + 1) * D]

    # --- head-batched scaled dot-product attention --------------------------
    # (H,TQ,D) x (H,S,D) -> (H,TQ,S); dot_general contracts D of both
    # operands, so no explicit k.T is materialized.
    logits = jnp.einsum('hqd,hkd->hqk', qh_s[...], kh_s[...],
                        preferred_element_type=jnp.float32)

    m = jnp.max(logits, axis=-1, keepdims=True)                 # f32 row max
    if softmax_bf16:
        # bf16 exp (EUP) and bf16 prob*recip on v6e/v7x; denom accum in f32.
        p = jnp.exp((logits - m).astype(jnp.bfloat16))
        denom = jnp.sum(p, axis=-1, keepdims=True, dtype=jnp.float32)
        attn = p * pl.reciprocal(denom, approx=True).astype(jnp.bfloat16)
    else:
        # v5e and older: no bf16 VPU/EUP — keep the softmax math in f32.
        p = jnp.exp(logits - m)
        denom = jnp.sum(p, axis=-1, keepdims=True)
        attn = (p * pl.reciprocal(denom, approx=True)).astype(jnp.bfloat16)
    # TODO(synk): attention-weight dropout is identity here (p=0.0 / eval).
    # NOTE: no key-padding mask — S is used unpadded (S % q_tile == 0).

    vals = jnp.einsum('hqk,hkd->hqd', attn, vh_s[...],
                      preferred_element_type=jnp.float32)       # (H, TQ, D)

    # Scatter head outputs into one bf16 (TQ, E) slab (no concatenate).
    for h in range(H):
        vals_s[:, h * D:(h + 1) * D] = vals[h].astype(vals_s.dtype)

    # Output projection.
    out = jnp.dot(vals_s[...], wo_ref[...],
                  preferred_element_type=jnp.float32) + bo_ref[0]
    o_ref[0] = out.astype(o_ref.dtype)


def fuse_params(params, num_heads):
    """One-time parameter prep: fuse QKV, fold 1/sqrt(D) into Q, cast to bf16.

    Call once (outside the hot path); pass the result to multihead_self_attention.
    """
    E = params["wq"].shape[0]
    assert E % num_heads == 0
    D = E // num_heads
    scale = 1.0 / (D ** 0.5)
    wqkv = jnp.concatenate(
        [params["wq"] * scale, params["wk"], params["wv"]], axis=1)      # (E, 3E)
    bqkv = jnp.concatenate(
        [params["bq"] * scale, params["bk"], params["bv"]]).reshape(1, 3 * E)
    return {
        "wqkv": wqkv.astype(jnp.bfloat16),
        "bqkv": bqkv.astype(jnp.float32),
        "wo": params["wo"].astype(jnp.bfloat16),
        "bo": params["bo"].reshape(1, E).astype(jnp.float32),
    }


def _vmem_capacity_bytes():
    try:
        info = pltpu.get_tpu_info()
        cap = getattr(info, "vmem_capacity_bytes", None)
        if cap:
            return int(cap)
    except Exception:
        pass
    return 64 * 1024 * 1024            # conservative (v7x-sized) fallback


def _is_pre_v6():
    """True on v5e and older (no bf16 VPU/EUP)."""
    try:
        kind = jax.devices()[0].device_kind.lower()
    except Exception:
        return False
    return any(tag in kind for tag in ("v2", "v3", "v4", "v5"))


def multihead_self_attention(x, fused_params, *, num_heads, q_tile=None):
    """x: (B, S, E).  fused_params: output of fuse_params()."""
    B, S, E = x.shape
    assert E % num_heads == 0
    D = E // num_heads
    out_dtype = x.dtype
    out_bytes = jnp.dtype(out_dtype).itemsize

    wqkv = fused_params["wqkv"]
    bqkv = fused_params["bqkv"]
    wo = fused_params["wo"]
    bo = fused_params["bo"]

    # bf16 matmul operands; biases / softmax / accumulation stay f32 in-kernel.
    xb = x.astype(jnp.bfloat16)

    softmax_bf16 = not _is_pre_v6()
    p_bytes = 2 if softmax_bf16 else 4
    cap = _vmem_capacity_bytes()

    def vmem_needed(tq, single_buffer_weights):
        bf, f4 = 2, 4
        wmul = 1 if single_buffer_weights else 2
        weights = wmul * ((3 * E * E + E * E) * bf + 4 * E * f4)
        blocks = 2 * S * E * bf + 2 * tq * E * out_bytes        # x in, out
        scratch = (num_heads * tq * D + 2 * num_heads * S * D) * bf + tq * E * bf
        interm = (S * 2 * E * f4                                # f32 K/V proj
                  + tq * E * (f4 + bf)                          # f32 Q proj + bf16 copy
                  + num_heads * tq * S * (f4 + 2 * p_bytes)     # logits + p + attn
                  + num_heads * tq * D * f4                     # PV einsum output
                  + 2 * tq * E * f4)                            # out-proj accum
        return weights + blocks + scratch + interm

    # --- query-tile selection: biggest tile that fits ~70% of this chip's VMEM
    if q_tile is None:
        cands = [S] + [c for c in (512, 256, 128) if c < S and S % c == 0]
        q_tile = cands[-1]
        for c in cands:
            if vmem_needed(c, True) <= int(0.7 * cap):
                q_tile = c
                break
    assert S % q_tile == 0 and (q_tile == S or q_tile % 8 == 0)
    nq = S // q_tile

    kernel = functools.partial(_mhsa_kernel, num_heads=num_heads, head_dim=D,
                               q_tile=q_tile, softmax_bf16=softmax_bf16)

    def run(single_buffer_weights):
        # Grid-invariant weights/biases: single-buffered when supported
        # (their index_maps never change, so there is no DMA to hide).
        wmode = ({"pipeline_mode": pl.Buffered(1)}
                 if single_buffer_weights else {})
        in_specs = [
            pl.BlockSpec((1, S, E), lambda b, qi: (b, 0, 0)),          # full seq
            pl.BlockSpec((E, 3 * E), lambda b, qi: (0, 0), **wmode),
            pl.BlockSpec((1, 3 * E), lambda b, qi: (0, 0), **wmode),
            pl.BlockSpec((E, E), lambda b, qi: (0, 0), **wmode),
            pl.BlockSpec((1, E), lambda b, qi: (0, 0), **wmode),
        ]
        out_spec = pl.BlockSpec((1, q_tile, E), lambda b, qi: (b, qi, 0))
        scratch_shapes = [
            pltpu.VMEM((num_heads, q_tile, D), jnp.bfloat16),  # head-major Q
            pltpu.VMEM((num_heads, S, D), jnp.bfloat16),       # cached head-major K
            pltpu.VMEM((num_heads, S, D), jnp.bfloat16),       # cached head-major V
            pltpu.VMEM((q_tile, E), jnp.bfloat16),             # attn-output slab
        ]
        need = vmem_needed(q_tile, single_buffer_weights)
        vmem_limit = int(min(max(int(1.25 * need), 32 * 1024 * 1024),
                             int(0.9 * cap)))
        return pl.pallas_call(
            kernel,
            out_shape=jax.ShapeDtypeStruct((B, S, E), out_dtype),
            grid_spec=pltpu.PrefetchScalarGridSpec(
                num_scalar_prefetch=0,
                grid=(B, nq),
                in_specs=in_specs,
                out_specs=out_spec,
                scratch_shapes=scratch_shapes,
            ),
            compiler_params=pltpu.CompilerParams(
                # B is "parallel" (pipelining + both v7x TensorCores); qi must
                # be "arbitrary" because the K/V cache is carried across it.
                dimension_semantics=("parallel", "arbitrary"),
                vmem_limit_bytes=vmem_limit),
        )(xb, wqkv, bqkv, wo, bo)

    try:
        return run(single_buffer_weights=True)
    except Exception:
        # Pallas build without pipeline_mode support on the top-level grid
        # pipeline: fall back to default double-buffered weight blocks.
        return run(single_buffer_weights=False)


def init_params(key, embed_dim):
    """Deterministic synthetic parameters (shapes match nn.Linear(E, E))."""
    keys = jax.random.split(key, 8)
    s = 1.0 / (embed_dim ** 0.5)
    def w(k):
        return jax.random.uniform(k, (embed_dim, embed_dim), jnp.float32, -s, s)
    def b(k):
        return jax.random.uniform(k, (embed_dim,), jnp.float32, -s, s)
    return {
        "wq": w(keys[0]), "bq": b(keys[1]),
        "wk": w(keys[2]), "bk": b(keys[3]),
        "wv": w(keys[4]), "bv": b(keys[5]),
        "wo": w(keys[6]), "bo": b(keys[7]),
    }


def _reference(x, params, num_heads):
    """Pure-JAX f32 reference mirroring the PyTorch forward (sanity check)."""
    B, S, E = x.shape
    D = E // num_heads
    def proj(w, b):
        return (x @ w + b).reshape(B, S, num_heads, D).transpose(0, 2, 1, 3)
    q = proj(params["wq"], params["bq"])
    k = proj(params["wk"], params["bk"])
    v = proj(params["wv"], params["bv"])
    logits = jnp.einsum("bhqd,bhkd->bhqk", q, k) / (D ** 0.5)
    attn = jax.nn.softmax(logits, axis=-1)
    vals = jnp.einsum("bhqk,bhkd->bhqd", attn, v)
    vals = vals.transpose(0, 2, 1, 3).reshape(B, S, E)
    return vals @ params["wo"] + params["bo"]


if __name__ == "__main__":
    B, S, E, H = 2, 8, 32, 4

    key = jax.random.PRNGKey(0)
    kx, kp = jax.random.split(key)
    x = jax.random.normal(kx, (B, S, E), jnp.float32)
    params = init_params(kp, E)

    fused = fuse_params(params, num_heads=H)        # one-time prep (off hot path)
    out = multihead_self_attention(x, fused, num_heads=H)
    out = jax.block_until_ready(out)

    ref = _reference(x, params, H)
    assert out.shape == (B, S, E)
    err = float(jnp.max(jnp.abs(out - ref)))
    # bf16 matmul operands + bf16 softmax probs + approx reciprocal ->
    # loose-but-meaningful tolerance.
    assert jnp.allclose(out, ref, atol=5e-2, rtol=5e-2), \
        f"mismatch vs reference (max abs err {err})"

    print("KERNEL_OK")
</pallas_src>

<mosaic_0001>
module attributes {stable_mosaic.version = 11 : i64} {
  func.func @_mhsa_kernel(%arg0: i32, %arg1: i32, %arg2: memref<1x8x32xbf16, #tpu.memory_space<vmem>>, %arg3: memref<32x96xbf16, #tpu.memory_space<vmem>>, %arg4: memref<1x96xf32, #tpu.memory_space<vmem>>, %arg5: memref<32x32xbf16, #tpu.memory_space<vmem>>, %arg6: memref<1x32xf32, #tpu.memory_space<vmem>>, %arg7: memref<1x8x32xf32, #tpu.memory_space<vmem>>, %arg8: memref<4x8x8xbf16, #tpu.memory_space<vmem>>, %arg9: memref<4x8x8xbf16, #tpu.memory_space<vmem>>, %arg10: memref<4x8x8xbf16, #tpu.memory_space<vmem>>, %arg11: memref<8x32xbf16, #tpu.memory_space<vmem>>) attributes {dimension_semantics = [#tpu.dimension_semantics<parallel>, #tpu.dimension_semantics<arbitrary>], iteration_bounds = array<i64: 2, 1>, scalar_prefetch = 0 : i64, scratch_operands = 4 : i64, tpu.core_type = #tpu.core_type<tc>, window_params = [{transform_indices = @transform_0, window_bounds = array<i64: 1, 8, 32>}, {pipeline_mode = #tpu.pipeline_mode<synchronous>, transform_indices = @transform_1, window_bounds = array<i64: 32, 96>}, {pipeline_mode = #tpu.pipeline_mode<synchronous>, transform_indices = @transform_2, window_bounds = array<i64: 1, 96>}, {pipeline_mode = #tpu.pipeline_mode<synchronous>, transform_indices = @transform_3, window_bounds = array<i64: 32, 32>}, {pipeline_mode = #tpu.pipeline_mode<synchronous>, transform_indices = @transform_4, window_bounds = array<i64: 1, 32>}, {transform_indices = @transform_5, window_bounds = array<i64: 1, 8, 32>}]} {
    %c0_i32 = arith.constant 0 : i32
    %0 = arith.cmpi eq, %arg1, %c0_i32 : i32
    %1 = arith.extui %0 : i1 to i32
    %c0_i32_0 = arith.constant 0 : i32
    %2 = arith.cmpi ne, %1, %c0_i32_0 : i32
    scf.if %2 {
      %c0_43 = arith.constant 0 : index
      %c0_44 = arith.constant 0 : index
      %c0_45 = arith.constant 0 : index
      %77 = vector.load %arg2[%c0_43, %c0_44, %c0_45] : memref<1x8x32xbf16, #tpu.memory_space<vmem>>, vector<1x8x32xbf16>
      %78 = vector.shape_cast %77 : vector<1x8x32xbf16> to vector<8x32xbf16>
      %c0_46 = arith.constant 0 : index
      %c32 = arith.constant 32 : index
      %79 = vector.load %arg3[%c0_46, %c32] : memref<32x96xbf16, #tpu.memory_space<vmem>>, vector<32x64xbf16>
      %cst_47 = arith.constant dense<0.000000e+00> : vector<8x64xf32>
      %80 = tpu.matmul %78, %79, %cst_47 {dimension_numbers = #tpu.dot_dimension_numbers<[1], [0], [0], [1], [0, 0, 1, 1], [], []>} : vector<8x32xbf16>, vector<32x64xbf16>, vector<8x64xf32> -> vector<8x64xf32>
      %c0_48 = arith.constant 0 : index
      %c32_49 = arith.constant 32 : index
      %81 = vector.load %arg4[%c0_48, %c32_49] : memref<1x96xf32, #tpu.memory_space<vmem>>, vector<1x64xf32>
      %82 = vector.shape_cast %81 : vector<1x64xf32> to vector<64xf32>
      %83 = vector.shape_cast %82 : vector<64xf32> to vector<1x64xf32>
      %84 = vector.broadcast %83 : vector<1x64xf32> to vector<8x64xf32>
      %85 = arith.addf %80, %84 : vector<8x64xf32>
      %86 = arith.truncf %85 : vector<8x64xf32> to vector<8x64xbf16>
      %87 = vector.extract_strided_slice %86 {offsets = [0, 0], sizes = [8, 8], strides = [1, 1]} : vector<8x64xbf16> to vector<8x8xbf16>
      %c0_50 = arith.constant 0 : index
      %c0_51 = arith.constant 0 : index
      %c0_52 = arith.constant 0 : index
      %88 = vector.load %arg9[%c0_50, %c0_51, %c0_52] : memref<4x8x8xbf16, #tpu.memory_space<vmem>>, vector<1x8x8xbf16>
      %89 = vector.shape_cast %88 : vector<1x8x8xbf16> to vector<8x8xbf16>
      %90 = vector.shape_cast %87 : vector<8x8xbf16> to vector<1x8x8xbf16>
      tpu.vector_store %arg9[%c0_50, %c0_51, %c0_52], %90 {strides = array<i32>} : memref<4x8x8xbf16, #tpu.memory_space<vmem>>, vector<1x8x8xbf16>,
      %91 = vector.extract_strided_slice %86 {offsets = [0, 32], sizes = [8, 8], strides = [1, 1]} : vector<8x64xbf16> to vector<8x8xbf16>
      %c0_53 = arith.constant 0 : index
      %c0_54 = arith.constant 0 : index
      %c0_55 = arith.constant 0 : index
      %92 = vector.load %arg10[%c0_53, %c0_54, %c0_55] : memref<4x8x8xbf16, #tpu.memory_space<vmem>>, vector<1x8x8xbf16>
      %93 = vector.shape_cast %92 : vector<1x8x8xbf16> to vector<8x8xbf16>
      %94 = vector.shape_cast %91 : vector<8x8xbf16> to vector<1x8x8xbf16>
      tpu.vector_store %arg10[%c0_53, %c0_54, %c0_55], %94 {strides = array<i32>} : memref<4x8x8xbf16, #tpu.memory_space<vmem>>, vector<1x8x8xbf16>,
      %95 = vector.extract_strided_slice %86 {offsets = [0, 8], sizes = [8, 8], strides = [1, 1]} : vector<8x64xbf16> to vector<8x8xbf16>
      %c1_56 = arith.constant 1 : index
      %c0_57 = arith.constant 0 : index
      %c0_58 = arith.constant 0 : index
      %96 = vector.load %arg9[%c1_56, %c0_57, %c0_58] : memref<4x8x8xbf16, #tpu.memory_space<vmem>>, vector<1x8x8xbf16>
      %97 = vector.shape_cast %96 : vector<1x8x8xbf16> to vector<8x8xbf16>
      %98 = vector.shape_cast %95 : vector<8x8xbf16> to vector<1x8x8xbf16>
      tpu.vector_store %arg9[%c1_56, %c0_57, %c0_58], %98 {strides = array<i32>} : memref<4x8x8xbf16, #tpu.memory_space<vmem>>, vector<1x8x8xbf16>,
      %99 = vector.extract_strided_slice %86 {offsets = [0, 40], sizes = [8, 8], strides = [1, 1]} : vector<8x64xbf16> to vector<8x8xbf16>
      %c1_59 = arith.constant 1 : index
      %c0_60 = arith.constant 0 : index
      %c0_61 = arith.constant 0 : index
      %100 = vector.load %arg10[%c1_59, %c0_60, %c0_61] : memref<4x8x8xbf16, #tpu.memory_space<vmem>>, vector<1x8x8xbf16>
      %101 = vector.shape_cast %100 : vector<1x8x8xbf16> to vector<8x8xbf16>
      %102 = vector.shape_cast %99 : vector<8x8xbf16> to vector<1x8x8xbf16>
      tpu.vector_store %arg10[%c1_59, %c0_60, %c0_61], %102 {strides = array<i32>} : memref<4x8x8xbf16, #tpu.memory_space<vmem>>, vector<1x8x8xbf16>,
      %103 = vector.extract_strided_slice %86 {offsets = [0, 16], sizes = [8, 8], strides = [1, 1]} : vector<8x64xbf16> to vector<8x8xbf16>
      %c2_62 = arith.constant 2 : index
      %c0_63 = arith.constant 0 : index
      %c0_64 = arith.constant 0 : index
      %104 = vector.load %arg9[%c2_62, %c0_63, %c0_64] : memref<4x8x8xbf16, #tpu.memory_space<vmem>>, vector<1x8x8xbf16>
      %105 = vector.shape_cast %104 : vector<1x8x8xbf16> to vector<8x8xbf16>
      %106 = vector.shape_cast %103 : vector<8x8xbf16> to vector<1x8x8xbf16>
      tpu.vector_store %arg9[%c2_62, %c0_63, %c0_64], %106 {strides = array<i32>} : memref<4x8x8xbf16, #tpu.memory_space<vmem>>, vector<1x8x8xbf16>,
      %107 = vector.extract_strided_slice %86 {offsets = [0, 48], sizes = [8, 8], strides = [1, 1]} : vector<8x64xbf16> to vector<8x8xbf16>
      %c2_65 = arith.constant 2 : index
      %c0_66 = arith.constant 0 : index
      %c0_67 = arith.constant 0 : index
      %108 = vector.load %arg10[%c2_65, %c0_66, %c0_67] : memref<4x8x8xbf16, #tpu.memory_space<vmem>>, vector<1x8x8xbf16>
      %109 = vector.shape_cast %108 : vector<1x8x8xbf16> to vector<8x8xbf16>
      %110 = vector.shape_cast %107 : vector<8x8xbf16> to vector<1x8x8xbf16>
      tpu.vector_store %arg10[%c2_65, %c0_66, %c0_67], %110 {strides = array<i32>} : memref<4x8x8xbf16, #tpu.memory_space<vmem>>, vector<1x8x8xbf16>,
      %111 = vector.extract_strided_slice %86 {offsets = [0, 24], sizes = [8, 8], strides = [1, 1]} : vector<8x64xbf16> to vector<8x8xbf16>
      %c3_68 = arith.constant 3 : index
      %c0_69 = arith.constant 0 : index
      %c0_70 = arith.constant 0 : index
      %112 = vector.load %arg9[%c3_68, %c0_69, %c0_70] : memref<4x8x8xbf16, #tpu.memory_space<vmem>>, vector<1x8x8xbf16>
      %113 = vector.shape_cast %112 : vector<1x8x8xbf16> to vector<8x8xbf16>
      %114 = vector.shape_cast %111 : vector<8x8xbf16> to vector<1x8x8xbf16>
      tpu.vector_store %arg9[%c3_68, %c0_69, %c0_70], %114 {strides = array<i32>} : memref<4x8x8xbf16, #tpu.memory_space<vmem>>, vector<1x8x8xbf16>,
      %115 = vector.extract_strided_slice %86 {offsets = [0, 56], sizes = [8, 8], strides = [1, 1]} : vector<8x64xbf16> to vector<8x8xbf16>
      %c3_71 = arith.constant 3 : index
      %c0_72 = arith.constant 0 : index
      %c0_73 = arith.constant 0 : index
      %116 = vector.load %arg10[%c3_71, %c0_72, %c0_73] : memref<4x8x8xbf16, #tpu.memory_space<vmem>>, vector<1x8x8xbf16>
      %117 = vector.shape_cast %116 : vector<1x8x8xbf16> to vector<8x8xbf16>
      %118 = vector.shape_cast %115 : vector<8x8xbf16> to vector<1x8x8xbf16>
      tpu.vector_store %arg10[%c3_71, %c0_72, %c0_73], %118 {strides = array<i32>} : memref<4x8x8xbf16, #tpu.memory_space<vmem>>, vector<1x8x8xbf16>,
    } else {
    }
    %c8_i32 = arith.constant 8 : i32
    %3 = arith.muli %arg1, %c8_i32 : i32
    %4 = tpu.assume_multiple %3, 8 : i32
    %c0 = arith.constant 0 : index
    %5 = arith.index_cast %4 : i32 to index
    %c0_1 = arith.constant 0 : index
    %6 = vector.load %arg2[%c0, %5, %c0_1] : memref<1x8x32xbf16, #tpu.memory_space<vmem>>, vector<1x8x32xbf16>
    %7 = vector.shape_cast %6 : vector<1x8x32xbf16> to vector<8x32xbf16>
    %c0_2 = arith.constant 0 : index
    %c0_3 = arith.constant 0 : index
    %8 = vector.load %arg3[%c0_2, %c0_3] : memref<32x96xbf16, #tpu.memory_space<vmem>>, vector<32x32xbf16>
    %cst = arith.constant dense<0.000000e+00> : vector<8x32xf32>
    %9 = tpu.matmul %7, %8, %cst {dimension_numbers = #tpu.dot_dimension_numbers<[1], [0], [0], [1], [0, 0, 1, 1], [], []>} : vector<8x32xbf16>, vector<32x32xbf16>, vector<8x32xf32> -> vector<8x32xf32>
    %c0_4 = arith.constant 0 : index
    %c0_5 = arith.constant 0 : index
    %10 = vector.load %arg4[%c0_4, %c0_5] : memref<1x96xf32, #tpu.memory_space<vmem>>, vector<1x32xf32>
    %11 = vector.shape_cast %10 : vector<1x32xf32> to vector<32xf32>
    %12 = vector.shape_cast %11 : vector<32xf32> to vector<1x32xf32>
    %13 = vector.broadcast %12 : vector<1x32xf32> to vector<8x32xf32>
    %14 = arith.addf %9, %13 : vector<8x32xf32>
    %15 = arith.truncf %14 : vector<8x32xf32> to vector<8x32xbf16>
    %16 = vector.extract_strided_slice %15 {offsets = [0, 0], sizes = [8, 8], strides = [1, 1]} : vector<8x32xbf16> to vector<8x8xbf16>
    %c0_6 = arith.constant 0 : index
    %c0_7 = arith.constant 0 : index
    %c0_8 = arith.constant 0 : index
    %17 = vector.load %arg8[%c0_6, %c0_7, %c0_8] : memref<4x8x8xbf16, #tpu.memory_space<vmem>>, vector<1x8x8xbf16>
    %18 = vector.shape_cast %17 : vector<1x8x8xbf16> to vector<8x8xbf16>
    %19 = vector.shape_cast %16 : vector<8x8xbf16> to vector<1x8x8xbf16>
    tpu.vector_store %arg8[%c0_6, %c0_7, %c0_8], %19 {strides = array<i32>} : memref<4x8x8xbf16, #tpu.memory_space<vmem>>, vector<1x8x8xbf16>,
    %20 = vector.extract_strided_slice %15 {offsets = [0, 8], sizes = [8, 8], strides = [1, 1]} : vector<8x32xbf16> to vector<8x8xbf16>
    %c1 = arith.constant 1 : index
    %c0_9 = arith.constant 0 : index
    %c0_10 = arith.constant 0 : index
    %21 = vector.load %arg8[%c1, %c0_9, %c0_10] : memref<4x8x8xbf16, #tpu.memory_space<vmem>>, vector<1x8x8xbf16>
    %22 = vector.shape_cast %21 : vector<1x8x8xbf16> to vector<8x8xbf16>
    %23 = vector.shape_cast %20 : vector<8x8xbf16> to vector<1x8x8xbf16>
    tpu.vector_store %arg8[%c1, %c0_9, %c0_10], %23 {strides = array<i32>} : memref<4x8x8xbf16, #tpu.memory_space<vmem>>, vector<1x8x8xbf16>,
    %24 = vector.extract_strided_slice %15 {offsets = [0, 16], sizes = [8, 8], strides = [1, 1]} : vector<8x32xbf16> to vector<8x8xbf16>
    %c2 = arith.constant 2 : index
    %c0_11 = arith.constant 0 : index
    %c0_12 = arith.constant 0 : index
    %25 = vector.load %arg8[%c2, %c0_11, %c0_12] : memref<4x8x8xbf16, #tpu.memory_space<vmem>>, vector<1x8x8xbf16>
    %26 = vector.shape_cast %25 : vector<1x8x8xbf16> to vector<8x8xbf16>
    %27 = vector.shape_cast %24 : vector<8x8xbf16> to vector<1x8x8xbf16>
    tpu.vector_store %arg8[%c2, %c0_11, %c0_12], %27 {strides = array<i32>} : memref<4x8x8xbf16, #tpu.memory_space<vmem>>, vector<1x8x8xbf16>,
    %28 = vector.extract_strided_slice %15 {offsets = [0, 24], sizes = [8, 8], strides = [1, 1]} : vector<8x32xbf16> to vector<8x8xbf16>
    %c3 = arith.constant 3 : index
    %c0_13 = arith.constant 0 : index
    %c0_14 = arith.constant 0 : index
    %29 = vector.load %arg8[%c3, %c0_13, %c0_14] : memref<4x8x8xbf16, #tpu.memory_space<vmem>>, vector<1x8x8xbf16>
    %30 = vector.shape_cast %29 : vector<1x8x8xbf16> to vector<8x8xbf16>
    %31 = vector.shape_cast %28 : vector<8x8xbf16> to vector<1x8x8xbf16>
    tpu.vector_store %arg8[%c3, %c0_13, %c0_14], %31 {strides = array<i32>} : memref<4x8x8xbf16, #tpu.memory_space<vmem>>, vector<1x8x8xbf16>,
    %c0_15 = arith.constant 0 : index
    %c0_16 = arith.constant 0 : index
    %c0_17 = arith.constant 0 : index
    %32 = vector.load %arg8[%c0_15, %c0_16, %c0_17] : memref<4x8x8xbf16, #tpu.memory_space<vmem>>, vector<4x8x8xbf16>
    %c0_18 = arith.constant 0 : index
    %c0_19 = arith.constant 0 : index
    %c0_20 = arith.constant 0 : index
    %33 = vector.load %arg9[%c0_18, %c0_19, %c0_20] : memref<4x8x8xbf16, #tpu.memory_space<vmem>>, vector<4x8x8xbf16>
    "tpu.trace_start"() <{level = 10 : i32, message = "hqd,hkd->hqk"}> : () -> ()
    %cst_21 = arith.constant dense<0.000000e+00> : vector<4x8x8xf32>
    %34 = tpu.matmul %32, %33, %cst_21 {dimension_numbers = #tpu.dot_dimension_numbers<[2], [2], [1], [1], [0, 0, 0, 1, 1, 1], [0], [0]>} : vector<4x8x8xbf16>, vector<4x8x8xbf16>, vector<4x8x8xf32> -> vector<4x8x8xf32>
    "tpu.trace_stop"() : () -> ()
    %cst_22 = arith.constant dense<0xFF800000> : vector<4x8xf32>
    %35 = vector.multi_reduction <maximumf>, %34, %cst_22 [2] : vector<4x8x8xf32> to vector<4x8xf32>
    %36 = vector.shape_cast %35 : vector<4x8xf32> to vector<4x8x1xf32>
    %37 = vector.broadcast %36 : vector<4x8x1xf32> to vector<4x8x8xf32>
    %38 = arith.subf %34, %37 : vector<4x8x8xf32>
    %39 = arith.truncf %38 : vector<4x8x8xf32> to vector<4x8x8xbf16>
    %40 = math.exp %39 : vector<4x8x8xbf16>
    %41 = arith.extf %40 : vector<4x8x8xbf16> to vector<4x8x8xf32>
    %cst_23 = arith.constant dense<0.000000e+00> : vector<4x8xf32>
    %42 = vector.multi_reduction <add>, %41, %cst_23 [2] : vector<4x8x8xf32> to vector<4x8xf32>
    %43 = vector.shape_cast %42 : vector<4x8xf32> to vector<4x8x1xf32>
    %44 = tpu.reciprocal %43 {approx = true} : vector<4x8x1xf32> -> vector<4x8x1xf32>
    %45 = arith.truncf %44 : vector<4x8x1xf32> to vector<4x8x1xbf16>
    %46 = vector.broadcast %45 : vector<4x8x1xbf16> to vector<4x8x8xbf16>
    %47 = arith.mulf %40, %46 : vector<4x8x8xbf16>
    %c0_24 = arith.constant 0 : index
    %c0_25 = arith.constant 0 : index
    %c0_26 = arith.constant 0 : index
    %48 = vector.load %arg10[%c0_24, %c0_25, %c0_26] : memref<4x8x8xbf16, #tpu.memory_space<vmem>>, vector<4x8x8xbf16>
    "tpu.trace_start"() <{level = 10 : i32, message = "hqk,hkd->hqd"}> : () -> ()
    %cst_27 = arith.constant dense<0.000000e+00> : vector<4x8x8xf32>
    %49 = tpu.matmul %47, %48, %cst_27 {dimension_numbers = #tpu.dot_dimension_numbers<[2], [1], [1], [2], [0, 0, 0, 1, 1, 2], [0], [0]>} : vector<4x8x8xbf16>, vector<4x8x8xbf16>, vector<4x8x8xf32> -> vector<4x8x8xf32>
    "tpu.trace_stop"() : () -> ()
    %50 = vector.extract_strided_slice %49 {offsets = [0, 0, 0], sizes = [1, 8, 8], strides = [1, 1, 1]} : vector<4x8x8xf32> to vector<1x8x8xf32>
    %51 = vector.shape_cast %50 : vector<1x8x8xf32> to vector<8x8xf32>
    %52 = arith.truncf %51 : vector<8x8xf32> to vector<8x8xbf16>
    %c0_28 = arith.constant 0 : index
    %c0_29 = arith.constant 0 : index
    %53 = vector.load %arg11[%c0_28, %c0_29] : memref<8x32xbf16, #tpu.memory_space<vmem>>, vector<8x8xbf16>
    tpu.vector_store %arg11[%c0_28, %c0_29], %52 {strides = array<i32>} : memref<8x32xbf16, #tpu.memory_space<vmem>>, vector<8x8xbf16>,
    %54 = vector.extract_strided_slice %49 {offsets = [1, 0, 0], sizes = [1, 8, 8], strides = [1, 1, 1]} : vector<4x8x8xf32> to vector<1x8x8xf32>
    %55 = vector.shape_cast %54 : vector<1x8x8xf32> to vector<8x8xf32>
    %56 = arith.truncf %55 : vector<8x8xf32> to vector<8x8xbf16>
    %c0_30 = arith.constant 0 : index
    %c8 = arith.constant 8 : index
    %57 = vector.load %arg11[%c0_30, %c8] : memref<8x32xbf16, #tpu.memory_space<vmem>>, vector<8x8xbf16>
    tpu.vector_store %arg11[%c0_30, %c8], %56 {strides = array<i32>} : memref<8x32xbf16, #tpu.memory_space<vmem>>, vector<8x8xbf16>,
    %58 = vector.extract_strided_slice %49 {offsets = [2, 0, 0], sizes = [1, 8, 8], strides = [1, 1, 1]} : vector<4x8x8xf32> to vector<1x8x8xf32>
    %59 = vector.shape_cast %58 : vector<1x8x8xf32> to vector<8x8xf32>
    %60 = arith.truncf %59 : vector<8x8xf32> to vector<8x8xbf16>
    %c0_31 = arith.constant 0 : index
    %c16 = arith.constant 16 : index
    %61 = vector.load %arg11[%c0_31, %c16] : memref<8x32xbf16, #tpu.memory_space<vmem>>, vector<8x8xbf16>
    tpu.vector_store %arg11[%c0_31, %c16], %60 {strides = array<i32>} : memref<8x32xbf16, #tpu.memory_space<vmem>>, vector<8x8xbf16>,
    %62 = vector.extract_strided_slice %49 {offsets = [3, 0, 0], sizes = [1, 8, 8], strides = [1, 1, 1]} : vector<4x8x8xf32> to vector<1x8x8xf32>
    %63 = vector.shape_cast %62 : vector<1x8x8xf32> to vector<8x8xf32>
    %64 = arith.truncf %63 : vector<8x8xf32> to vector<8x8xbf16>
    %c0_32 = arith.constant 0 : index
    %c24 = arith.constant 24 : index
    %65 = vector.load %arg11[%c0_32, %c24] : memref<8x32xbf16, #tpu.memory_space<vmem>>, vector<8x8xbf16>
    tpu.vector_store %arg11[%c0_32, %c24], %64 {strides = array<i32>} : memref<8x32xbf16, #tpu.memory_space<vmem>>, vector<8x8xbf16>,
    %c0_33 = arith.constant 0 : index
    %c0_34 = arith.constant 0 : index
    %66 = vector.load %arg11[%c0_33, %c0_34] : memref<8x32xbf16, #tpu.memory_space<vmem>>, vector<8x32xbf16>
    %c0_35 = arith.constant 0 : index
    %c0_36 = arith.constant 0 : index
    %67 = vector.load %arg5[%c0_35, %c0_36] : memref<32x32xbf16, #tpu.memory_space<vmem>>, vector<32x32xbf16>
    %cst_37 = arith.constant dense<0.000000e+00> : vector<8x32xf32>
    %68 = tpu.matmul %66, %67, %cst_37 {dimension_numbers = #tpu.dot_dimension_numbers<[1], [0], [0], [1], [0, 0, 1, 1], [], []>} : vector<8x32xbf16>, vector<32x32xbf16>, vector<8x32xf32> -> vector<8x32xf32>
    %c0_38 = arith.constant 0 : index
    %c0_39 = arith.constant 0 : index
    %69 = vector.load %arg6[%c0_38, %c0_39] : memref<1x32xf32, #tpu.memory_space<vmem>>, vector<1x32xf32>
    %70 = vector.shape_cast %69 : vector<1x32xf32> to vector<32xf32>
    %71 = vector.shape_cast %70 : vector<32xf32> to vector<1x32xf32>
    %72 = vector.broadcast %71 : vector<1x32xf32> to vector<8x32xf32>
    %73 = arith.addf %68, %72 : vector<8x32xf32>
    %c0_40 = arith.constant 0 : index
    %c0_41 = arith.constant 0 : index
    %c0_42 = arith.constant 0 : index
    %74 = vector.load %arg7[%c0_40, %c0_41, %c0_42] : memref<1x8x32xf32, #tpu.memory_space<vmem>>, vector<1x8x32xf32>
    %75 = vector.shape_cast %74 : vector<1x8x32xf32> to vector<8x32xf32>
    %76 = vector.shape_cast %73 : vector<8x32xf32> to vector<1x8x32xf32>
    tpu.vector_store %arg7[%c0_40, %c0_41, %c0_42], %76 {strides = array<i32>} : memref<1x8x32xf32, #tpu.memory_space<vmem>>, vector<1x8x32xf32>,
    return
  }
  func.func @transform_0(%arg0: i32, %arg1: i32) -> (i32, i32, i32) {
    %c0_i32 = arith.constant 0 : i32
    %c0_i32_0 = arith.constant 0 : i32
    %c0_i32_1 = arith.constant 0 : i32
    return %arg0, %c0_i32, %c0_i32_0 : i32, i32, i32
  }
  func.func @transform_1(%arg0: i32, %arg1: i32) -> (i32, i32) {
    %c0_i32 = arith.constant 0 : i32
    %c0_i32_0 = arith.constant 0 : i32
    %c0_i32_1 = arith.constant 0 : i32
    return %c0_i32, %c0_i32_0 : i32, i32
  }
  func.func @transform_2(%arg0: i32, %arg1: i32) -> (i32, i32) {
    %c0_i32 = arith.constant 0 : i32
    %c0_i32_0 = arith.constant 0 : i32
    %c0_i32_1 = arith.constant 0 : i32
    return %c0_i32, %c0_i32_0 : i32, i32
  }
  func.func @transform_3(%arg0: i32, %arg1: i32) -> (i32, i32) {
    %c0_i32 = arith.constant 0 : i32
    %c0_i32_0 = arith.constant 0 : i32
    %c0_i32_1 = arith.constant 0 : i32
    return %c0_i32, %c0_i32_0 : i32, i32
  }
  func.func @transform_4(%arg0: i32, %arg1: i32) -> (i32, i32) {
    %c0_i32 = arith.constant 0 : i32
    %c0_i32_0 = arith.constant 0 : i32
    %c0_i32_1 = arith.constant 0 : i32
    return %c0_i32, %c0_i32_0 : i32, i32
  }
  func.func @transform_5(%arg0: i32, %arg1: i32) -> (i32, i32, i32) {
    %c0_i32 = arith.constant 0 : i32
    %c0_i32_0 = arith.constant 0 : i32
    return %arg0, %arg1, %c0_i32 : i32, i32, i32
  }
}

module attributes {stable_mosaic.version = 11 : i64} {
  func.func @_mhsa_kernel(%arg0: i32, %arg1: i32, %arg2: memref<1x8x32xbf16, #tpu.memory_space<vmem>>, %arg3: memref<32x96xbf16, #tpu.memory_space<vmem>>, %arg4: memref<1x96xf32, #tpu.memory_space<vmem>>, %arg5: memref<32x32xbf16, #tpu.memory_space<vmem>>, %arg6: memref<1x32xf32, #tpu.memory_space<vmem>>, %arg7: memref<1x8x32xf32, #tpu.memory_space<vmem>>, %arg8: memref<4x8x8xbf16, #tpu.memory_space<vmem>>, %arg9: memref<4x8x8xbf16, #tpu.memory_space<vmem>>, %arg10: memref<4x8x8xbf16, #tpu.memory_space<vmem>>, %arg11: memref<8x32xbf16, #tpu.memory_space<vmem>>) attributes {dimension_semantics = [#tpu.dimension_semantics<parallel>, #tpu.dimension_semantics<arbitrary>], iteration_bounds = array<i64: 2, 1>, scalar_prefetch = 0 : i64, scratch_operands = 4 : i64, tpu.core_type = #tpu.core_type<tc>, window_params = [{transform_indices = @transform_0, window_bounds = array<i64: 1, 8, 32>}, {pipeline_mode = #tpu.pipeline_mode<synchronous>, transform_indices = @transform_1, window_bounds = array<i64: 32, 96>}, {pipeline_mode = #tpu.pipeline_mode<synchronous>, transform_indices = @transform_2, window_bounds = array<i64: 1, 96>}, {pipeline_mode = #tpu.pipeline_mode<synchronous>, transform_indices = @transform_3, window_bounds = array<i64: 32, 32>}, {pipeline_mode = #tpu.pipeline_mode<synchronous>, transform_indices = @transform_4, window_bounds = array<i64: 1, 32>}, {transform_indices = @transform_5, window_bounds = array<i64: 1, 8, 32>}]} {
    %c0_i32 = arith.constant 0 : i32
    %0 = arith.cmpi eq, %arg1, %c0_i32 : i32
    %1 = arith.extui %0 : i1 to i32
    %c0_i32_0 = arith.constant 0 : i32
    %2 = arith.cmpi ne, %1, %c0_i32_0 : i32
    scf.if %2 {
      %c0_43 = arith.constant 0 : index
      %c0_44 = arith.constant 0 : index
      %c0_45 = arith.constant 0 : index
      %77 = vector.load %arg2[%c0_43, %c0_44, %c0_45] : memref<1x8x32xbf16, #tpu.memory_space<vmem>>, vector<1x8x32xbf16>
      %78 = vector.shape_cast %77 : vector<1x8x32xbf16> to vector<8x32xbf16>
      %c0_46 = arith.constant 0 : index
      %c32 = arith.constant 32 : index
      %79 = vector.load %arg3[%c0_46, %c32] : memref<32x96xbf16, #tpu.memory_space<vmem>>, vector<32x64xbf16>
      %cst_47 = arith.constant dense<0.000000e+00> : vector<8x64xf32>
      %80 = tpu.matmul %78, %79, %cst_47 {dimension_numbers = #tpu.dot_dimension_numbers<[1], [0], [0], [1], [0, 0, 1, 1], [], []>} : vector<8x32xbf16>, vector<32x64xbf16>, vector<8x64xf32> -> vector<8x64xf32>
      %c0_48 = arith.constant 0 : index
      %c32_49 = arith.constant 32 : index
      %81 = vector.load %arg4[%c0_48, %c32_49] : memref<1x96xf32, #tpu.memory_space<vmem>>, vector<1x64xf32>
      %82 = vector.shape_cast %81 : vector<1x64xf32> to vector<64xf32>
      %83 = vector.shape_cast %82 : vector<64xf32> to vector<1x64xf32>
      %84 = vector.broadcast %83 : vector<1x64xf32> to vector<8x64xf32>
      %85 = arith.addf %80, %84 : vector<8x64xf32>
      %86 = arith.truncf %85 : vector<8x64xf32> to vector<8x64xbf16>
      %87 = vector.extract_strided_slice %86 {offsets = [0, 0], sizes = [8, 8], strides = [1, 1]} : vector<8x64xbf16> to vector<8x8xbf16>
      %c0_50 = arith.constant 0 : index
      %c0_51 = arith.constant 0 : index
      %c0_52 = arith.constant 0 : index
      %88 = vector.load %arg9[%c0_50, %c0_51, %c0_52] : memref<4x8x8xbf16, #tpu.memory_space<vmem>>, vector<1x8x8xbf16>
      %89 = vector.shape_cast %88 : vector<1x8x8xbf16> to vector<8x8xbf16>
      %90 = vector.shape_cast %87 : vector<8x8xbf16> to vector<1x8x8xbf16>
      tpu.vector_store %arg9[%c0_50, %c0_51, %c0_52], %90 {strides = array<i32>} : memref<4x8x8xbf16, #tpu.memory_space<vmem>>, vector<1x8x8xbf16>,
      %91 = vector.extract_strided_slice %86 {offsets = [0, 32], sizes = [8, 8], strides = [1, 1]} : vector<8x64xbf16> to vector<8x8xbf16>
      %c0_53 = arith.constant 0 : index
      %c0_54 = arith.constant 0 : index
      %c0_55 = arith.constant 0 : index
      %92 = vector.load %arg10[%c0_53, %c0_54, %c0_55] : memref<4x8x8xbf16, #tpu.memory_space<vmem>>, vector<1x8x8xbf16>
      %93 = vector.shape_cast %92 : vector<1x8x8xbf16> to vector<8x8xbf16>
      %94 = vector.shape_cast %91 : vector<8x8xbf16> to vector<1x8x8xbf16>
      tpu.vector_store %arg10[%c0_53, %c0_54, %c0_55], %94 {strides = array<i32>} : memref<4x8x8xbf16, #tpu.memory_space<vmem>>, vector<1x8x8xbf16>,
      %95 = vector.extract_strided_slice %86 {offsets = [0, 8], sizes = [8, 8], strides = [1, 1]} : vector<8x64xbf16> to vector<8x8xbf16>
      %c1_56 = arith.constant 1 : index
      %c0_57 = arith.constant 0 : index
      %c0_58 = arith.constant 0 : index
      %96 = vector.load %arg9[%c1_56, %c0_57, %c0_58] : memref<4x8x8xbf16, #tpu.memory_space<vmem>>, vector<1x8x8xbf16>
      %97 = vector.shape_cast %96 : vector<1x8x8xbf16> to vector<8x8xbf16>
      %98 = vector.shape_cast %95 : vector<8x8xbf16> to vector<1x8x8xbf16>
      tpu.vector_store %arg9[%c1_56, %c0_57, %c0_58], %98 {strides = array<i32>} : memref<4x8x8xbf16, #tpu.memory_space<vmem>>, vector<1x8x8xbf16>,
      %99 = vector.extract_strided_slice %86 {offsets = [0, 40], sizes = [8, 8], strides = [1, 1]} : vector<8x64xbf16> to vector<8x8xbf16>
      %c1_59 = arith.constant 1 : index
      %c0_60 = arith.constant 0 : index
      %c0_61 = arith.constant 0 : index
      %100 = vector.load %arg10[%c1_59, %c0_60, %c0_61] : memref<4x8x8xbf16, #tpu.memory_space<vmem>>, vector<1x8x8xbf16>
      %101 = vector.shape_cast %100 : vector<1x8x8xbf16> to vector<8x8xbf16>
      %102 = vector.shape_cast %99 : vector<8x8xbf16> to vector<1x8x8xbf16>
      tpu.vector_store %arg10[%c1_59, %c0_60, %c0_61], %102 {strides = array<i32>} : memref<4x8x8xbf16, #tpu.memory_space<vmem>>, vector<1x8x8xbf16>,
      %103 = vector.extract_strided_slice %86 {offsets = [0, 16], sizes = [8, 8], strides = [1, 1]} : vector<8x64xbf16> to vector<8x8xbf16>
      %c2_62 = arith.constant 2 : index
      %c0_63 = arith.constant 0 : index
      %c0_64 = arith.constant 0 : index
      %104 = vector.load %arg9[%c2_62, %c0_63, %c0_64] : memref<4x8x8xbf16, #tpu.memory_space<vmem>>, vector<1x8x8xbf16>
      %105 = vector.shape_cast %104 : vector<1x8x8xbf16> to vector<8x8xbf16>
      %106 = vector.shape_cast %103 : vector<8x8xbf16> to vector<1x8x8xbf16>
      tpu.vector_store %arg9[%c2_62, %c0_63, %c0_64], %106 {strides = array<i32>} : memref<4x8x8xbf16, #tpu.memory_space<vmem>>, vector<1x8x8xbf16>,
      %107 = vector.extract_strided_slice %86 {offsets = [0, 48], sizes = [8, 8], strides = [1, 1]} : vector<8x64xbf16> to vector<8x8xbf16>
      %c2_65 = arith.constant 2 : index
      %c0_66 = arith.constant 0 : index
      %c0_67 = arith.constant 0 : index
      %108 = vector.load %arg10[%c2_65, %c0_66, %c0_67] : memref<4x8x8xbf16, #tpu.memory_space<vmem>>, vector<1x8x8xbf16>
      %109 = vector.shape_cast %108 : vector<1x8x8xbf16> to vector<8x8xbf16>
      %110 = vector.shape_cast %107 : vector<8x8xbf16> to vector<1x8x8xbf16>
      tpu.vector_store %arg10[%c2_65, %c0_66, %c0_67], %110 {strides = array<i32>} : memref<4x8x8xbf16, #tpu.memory_space<vmem>>, vector<1x8x8xbf16>,
      %111 = vector.extract_strided_slice %86 {offsets = [0, 24], sizes = [8, 8], strides = [1, 1]} : vector<8x64xbf16> to vector<8x8xbf16>
      %c3_68 = arith.constant 3 : index
      %c0_69 = arith.constant 0 : index
      %c0_70 = arith.constant 0 : index
      %112 = vector.load %arg9[%c3_68, %c0_69, %c0_70] : memref<4x8x8xbf16, #tpu.memory_space<vmem>>, vector<1x8x8xbf16>
      %113 = vector.shape_cast %112 : vector<1x8x8xbf16> to vector<8x8xbf16>
      %114 = vector.shape_cast %111 : vector<8x8xbf16> to vector<1x8x8xbf16>
      tpu.vector_store %arg9[%c3_68, %c0_69, %c0_70], %114 {strides = array<i32>} : memref<4x8x8xbf16, #tpu.memory_space<vmem>>, vector<1x8x8xbf16>,
      %115 = vector.extract_strided_slice %86 {offsets = [0, 56], sizes = [8, 8], strides = [1, 1]} : vector<8x64xbf16> to vector<8x8xbf16>
      %c3_71 = arith.constant 3 : index
      %c0_72 = arith.constant 0 : index
      %c0_73 = arith.constant 0 : index
      %116 = vector.load %arg10[%c3_71, %c0_72, %c0_73] : memref<4x8x8xbf16, #tpu.memory_space<vmem>>, vector<1x8x8xbf16>
      %117 = vector.shape_cast %116 : vector<1x8x8xbf16> to vector<8x8xbf16>
      %118 = vector.shape_cast %115 : vector<8x8xbf16> to vector<1x8x8xbf16>
      tpu.vector_store %arg10[%c3_71, %c0_72, %c0_73], %118 {strides = array<i32>} : memref<4x8x8xbf16, #tpu.memory_space<vmem>>, vector<1x8x8xbf16>,
    } else {
    }
    %c8_i32 = arith.constant 8 : i32
    %3 = arith.muli %arg1, %c8_i32 : i32
    %4 = tpu.assume_multiple %3, 8 : i32
    %c0 = arith.constant 0 : index
    %5 = arith.index_cast %4 : i32 to index
    %c0_1 = arith.constant 0 : index
    %6 = vector.load %arg2[%c0, %5, %c0_1] : memref<1x8x32xbf16, #tpu.memory_space<vmem>>, vector<1x8x32xbf16>
    %7 = vector.shape_cast %6 : vector<1x8x32xbf16> to vector<8x32xbf16>
    %c0_2 = arith.constant 0 : index
    %c0_3 = arith.constant 0 : index
    %8 = vector.load %arg3[%c0_2, %c0_3] : memref<32x96xbf16, #tpu.memory_space<vmem>>, vector<32x32xbf16>
    %cst = arith.constant dense<0.000000e+00> : vector<8x32xf32>
    %9 = tpu.matmul %7, %8, %cst {dimension_numbers = #tpu.dot_dimension_numbers<[1], [0], [0], [1], [0, 0, 1, 1], [], []>} : vector<8x32xbf16>, vector<32x32xbf16>, vector<8x32xf32> -> vector<8x32xf32>
    %c0_4 = arith.constant 0 : index
    %c0_5 = arith.constant 0 : index
    %10 = vector.load %arg4[%c0_4, %c0_5] : memref<1x96xf32, #tpu.memory_space<vmem>>, vector<1x32xf32>
    %11 = vector.shape_cast %10 : vector<1x32xf32> to vector<32xf32>
    %12 = vector.shape_cast %11 : vector<32xf32> to vector<1x32xf32>
    %13 = vector.broadcast %12 : vector<1x32xf32> to vector<8x32xf32>
    %14 = arith.addf %9, %13 : vector<8x32xf32>
    %15 = arith.truncf %14 : vector<8x32xf32> to vector<8x32xbf16>
    %16 = vector.extract_strided_slice %15 {offsets = [0, 0], sizes = [8, 8], strides = [1, 1]} : vector<8x32xbf16> to vector<8x8xbf16>
    %c0_6 = arith.constant 0 : index
    %c0_7 = arith.constant 0 : index
    %c0_8 = arith.constant 0 : index
    %17 = vector.load %arg8[%c0_6, %c0_7, %c0_8] : memref<4x8x8xbf16, #tpu.memory_space<vmem>>, vector<1x8x8xbf16>
    %18 = vector.shape_cast %17 : vector<1x8x8xbf16> to vector<8x8xbf16>
    %19 = vector.shape_cast %16 : vector<8x8xbf16> to vector<1x8x8xbf16>
    tpu.vector_store %arg8[%c0_6, %c0_7, %c0_8], %19 {strides = array<i32>} : memref<4x8x8xbf16, #tpu.memory_space<vmem>>, vector<1x8x8xbf16>,
    %20 = vector.extract_strided_slice %15 {offsets = [0, 8], sizes = [8, 8], strides = [1, 1]} : vector<8x32xbf16> to vector<8x8xbf16>
    %c1 = arith.constant 1 : index
    %c0_9 = arith.constant 0 : index
    %c0_10 = arith.constant 0 : index
    %21 = vector.load %arg8[%c1, %c0_9, %c0_10] : memref<4x8x8xbf16, #tpu.memory_space<vmem>>, vector<1x8x8xbf16>
    %22 = vector.shape_cast %21 : vector<1x8x8xbf16> to vector<8x8xbf16>
    %23 = vector.shape_cast %20 : vector<8x8xbf16> to vector<1x8x8xbf16>
    tpu.vector_store %arg8[%c1, %c0_9, %c0_10], %23 {strides = array<i32>} : memref<4x8x8xbf16, #tpu.memory_space<vmem>>, vector<1x8x8xbf16>,
    %24 = vector.extract_strided_slice %15 {offsets = [0, 16], sizes = [8, 8], strides = [1, 1]} : vector<8x32xbf16> to vector<8x8xbf16>
    %c2 = arith.constant 2 : index
    %c0_11 = arith.constant 0 : index
    %c0_12 = arith.constant 0 : index
    %25 = vector.load %arg8[%c2, %c0_11, %c0_12] : memref<4x8x8xbf16, #tpu.memory_space<vmem>>, vector<1x8x8xbf16>
    %26 = vector.shape_cast %25 : vector<1x8x8xbf16> to vector<8x8xbf16>
    %27 = vector.shape_cast %24 : vector<8x8xbf16> to vector<1x8x8xbf16>
    tpu.vector_store %arg8[%c2, %c0_11, %c0_12], %27 {strides = array<i32>} : memref<4x8x8xbf16, #tpu.memory_space<vmem>>, vector<1x8x8xbf16>,
    %28 = vector.extract_strided_slice %15 {offsets = [0, 24], sizes = [8, 8], strides = [1, 1]} : vector<8x32xbf16> to vector<8x8xbf16>
    %c3 = arith.constant 3 : index
    %c0_13 = arith.constant 0 : index
    %c0_14 = arith.constant 0 : index
    %29 = vector.load %arg8[%c3, %c0_13, %c0_14] : memref<4x8x8xbf16, #tpu.memory_space<vmem>>, vector<1x8x8xbf16>
    %30 = vector.shape_cast %29 : vector<1x8x8xbf16> to vector<8x8xbf16>
    %31 = vector.shape_cast %28 : vector<8x8xbf16> to vector<1x8x8xbf16>
    tpu.vector_store %arg8[%c3, %c0_13, %c0_14], %31 {strides = array<i32>} : memref<4x8x8xbf16, #tpu.memory_space<vmem>>, vector<1x8x8xbf16>,
    %c0_15 = arith.constant 0 : index
    %c0_16 = arith.constant 0 : index
    %c0_17 = arith.constant 0 : index
    %32 = vector.load %arg8[%c0_15, %c0_16, %c0_17] : memref<4x8x8xbf16, #tpu.memory_space<vmem>>, vector<4x8x8xbf16>
    %c0_18 = arith.constant 0 : index
    %c0_19 = arith.constant 0 : index
    %c0_20 = arith.constant 0 : index
    %33 = vector.load %arg9[%c0_18, %c0_19, %c0_20] : memref<4x8x8xbf16, #tpu.memory_space<vmem>>, vector<4x8x8xbf16>
    "tpu.trace_start"() <{level = 10 : i32, message = "hqd,hkd->hqk"}> : () -> ()
    %cst_21 = arith.constant dense<0.000000e+00> : vector<4x8x8xf32>
    %34 = tpu.matmul %32, %33, %cst_21 {dimension_numbers = #tpu.dot_dimension_numbers<[2], [2], [1], [1], [0, 0, 0, 1, 1, 1], [0], [0]>} : vector<4x8x8xbf16>, vector<4x8x8xbf16>, vector<4x8x8xf32> -> vector<4x8x8xf32>
    "tpu.trace_stop"() : () -> ()
    %cst_22 = arith.constant dense<0xFF800000> : vector<4x8xf32>
    %35 = vector.multi_reduction <maximumf>, %34, %cst_22 [2] : vector<4x8x8xf32> to vector<4x8xf32>
    %36 = vector.shape_cast %35 : vector<4x8xf32> to vector<4x8x1xf32>
    %37 = vector.broadcast %36 : vector<4x8x1xf32> to vector<4x8x8xf32>
    %38 = arith.subf %34, %37 : vector<4x8x8xf32>
    %39 = arith.truncf %38 : vector<4x8x8xf32> to vector<4x8x8xbf16>
    %40 = math.exp %39 : vector<4x8x8xbf16>
    %41 = arith.extf %40 : vector<4x8x8xbf16> to vector<4x8x8xf32>
    %cst_23 = arith.constant dense<0.000000e+00> : vector<4x8xf32>
    %42 = vector.multi_reduction <add>, %41, %cst_23 [2] : vector<4x8x8xf32> to vector<4x8xf32>
    %43 = vector.shape_cast %42 : vector<4x8xf32> to vector<4x8x1xf32>
    %44 = tpu.reciprocal %43 {approx = true} : vector<4x8x1xf32> -> vector<4x8x1xf32>
    %45 = arith.truncf %44 : vector<4x8x1xf32> to vector<4x8x1xbf16>
    %46 = vector.broadcast %45 : vector<4x8x1xbf16> to vector<4x8x8xbf16>
    %47 = arith.mulf %40, %46 : vector<4x8x8xbf16>
    %c0_24 = arith.constant 0 : index
    %c0_25 = arith.constant 0 : index
    %c0_26 = arith.constant 0 : index
    %48 = vector.load %arg10[%c0_24, %c0_25, %c0_26] : memref<4x8x8xbf16, #tpu.memory_space<vmem>>, vector<4x8x8xbf16>
    "tpu.trace_start"() <{level = 10 : i32, message = "hqk,hkd->hqd"}> : () -> ()
    %cst_27 = arith.constant dense<0.000000e+00> : vector<4x8x8xf32>
    %49 = tpu.matmul %47, %48, %cst_27 {dimension_numbers = #tpu.dot_dimension_numbers<[2], [1], [1], [2], [0, 0, 0, 1, 1, 2], [0], [0]>} : vector<4x8x8xbf16>, vector<4x8x8xbf16>, vector<4x8x8xf32> -> vector<4x8x8xf32>
    "tpu.trace_stop"() : () -> ()
    %50 = vector.extract_strided_slice %49 {offsets = [0, 0, 0], sizes = [1, 8, 8], strides = [1, 1, 1]} : vector<4x8x8xf32> to vector<1x8x8xf32>
    %51 = vector.shape_cast %50 : vector<1x8x8xf32> to vector<8x8xf32>
    %52 = arith.truncf %51 : vector<8x8xf32> to vector<8x8xbf16>
    %c0_28 = arith.constant 0 : index
    %c0_29 = arith.constant 0 : index
    %53 = vector.load %arg11[%c0_28, %c0_29] : memref<8x32xbf16, #tpu.memory_space<vmem>>, vector<8x8xbf16>
    tpu.vector_store %arg11[%c0_28, %c0_29], %52 {strides = array<i32>} : memref<8x32xbf16, #tpu.memory_space<vmem>>, vector<8x8xbf16>,
    %54 = vector.extract_strided_slice %49 {offsets = [1, 0, 0], sizes = [1, 8, 8], strides = [1, 1, 1]} : vector<4x8x8xf32> to vector<1x8x8xf32>
    %55 = vector.shape_cast %54 : vector<1x8x8xf32> to vector<8x8xf32>
    %56 = arith.truncf %55 : vector<8x8xf32> to vector<8x8xbf16>
    %c0_30 = arith.constant 0 : index
    %c8 = arith.constant 8 : index
    %57 = vector.load %arg11[%c0_30, %c8] : memref<8x32xbf16, #tpu.memory_space<vmem>>, vector<8x8xbf16>
    tpu.vector_store %arg11[%c0_30, %c8], %56 {strides = array<i32>} : memref<8x32xbf16, #tpu.memory_space<vmem>>, vector<8x8xbf16>,
    %58 = vector.extract_strided_slice %49 {offsets = [2, 0, 0], sizes = [1, 8, 8], strides = [1, 1, 1]} : vector<4x8x8xf32> to vector<1x8x8xf32>
    %59 = vector.shape_cast %58 : vector<1x8x8xf32> to vector<8x8xf32>
    %60 = arith.truncf %59 : vector<8x8xf32> to vector<8x8xbf16>
    %c0_31 = arith.constant 0 : index
    %c16 = arith.constant 16 : index
    %61 = vector.load %arg11[%c0_31, %c16] : memref<8x32xbf16, #tpu.memory_space<vmem>>, vector<8x8xbf16>
    tpu.vector_store %arg11[%c0_31, %c16], %60 {strides = array<i32>} : memref<8x32xbf16, #tpu.memory_space<vmem>>, vector<8x8xbf16>,
    %62 = vector.extract_strided_slice %49 {offsets = [3, 0, 0], sizes = [1, 8, 8], strides = [1, 1, 1]} : vector<4x8x8xf32> to vector<1x8x8xf32>
    %63 = vector.shape_cast %62 : vector<1x8x8xf32> to vector<8x8xf32>
    %64 = arith.truncf %63 : vector<8x8xf32> to vector<8x8xbf16>
    %c0_32 = arith.constant 0 : index
    %c24 = arith.constant 24 : index
    %65 = vector.load %arg11[%c0_32, %c24] : memref<8x32xbf16, #tpu.memory_space<vmem>>, vector<8x8xbf16>
    tpu.vector_store %arg11[%c0_32, %c24], %64 {strides = array<i32>} : memref<8x32xbf16, #tpu.memory_space<vmem>>, vector<8x8xbf16>,
    %c0_33 = arith.constant 0 : index
    %c0_34 = arith.constant 0 : index
    %66 = vector.load %arg11[%c0_33, %c0_34] : memref<8x32xbf16, #tpu.memory_space<vmem>>, vector<8x32xbf16>
    %c0_35 = arith.constant 0 : index
    %c0_36 = arith.constant 0 : index
    %67 = vector.load %arg5[%c0_35, %c0_36] : memref<32x32xbf16, #tpu.memory_space<vmem>>, vector<32x32xbf16>
    %cst_37 = arith.constant dense<0.000000e+00> : vector<8x32xf32>
    %68 = tpu.matmul %66, %67, %cst_37 {dimension_numbers = #tpu.dot_dimension_numbers<[1], [0], [0], [1], [0, 0, 1, 1], [], []>} : vector<8x32xbf16>, vector<32x32xbf16>, vector<8x32xf32> -> vector<8x32xf32>
    %c0_38 = arith.constant 0 : index
    %c0_39 = arith.constant 0 : index
    %69 = vector.load %arg6[%c0_38, %c0_39] : memref<1x32xf32, #tpu.memory_space<vmem>>, vector<1x32xf32>
    %70 = vector.shape_cast %69 : vector<1x32xf32> to vector<32xf32>
    %71 = vector.shape_cast %70 : vector<32xf32> to vector<1x32xf32>
    %72 = vector.broadcast %71 : vector<1x32xf32> to vector<8x32xf32>
    %73 = arith.addf %68, %72 : vector<8x32xf32>
    %c0_40 = arith.constant 0 : index
    %c0_41 = arith.constant 0 : index
    %c0_42 = arith.constant 0 : index
    %74 = vector.load %arg7[%c0_40, %c0_41, %c0_42] : memref<1x8x32xf32, #tpu.memory_space<vmem>>, vector<1x8x32xf32>
    %75 = vector.shape_cast %74 : vector<1x8x32xf32> to vector<8x32xf32>
    %76 = vector.shape_cast %73 : vector<8x32xf32> to vector<1x8x32xf32>
    tpu.vector_store %arg7[%c0_40, %c0_41, %c0_42], %76 {strides = array<i32>} : memref<1x8x32xf32, #tpu.memory_space<vmem>>, vector<1x8x32xf32>,
    return
  }
  func.func @transform_0(%arg0: i32, %arg1: i32) -> (i32, i32, i32) {
    %c0_i32 = arith.constant 0 : i32
    %c0_i32_0 = arith.constant 0 : i32
    %c0_i32_1 = arith.constant 0 : i32
    return %arg0, %c0_i32, %c0_i32_0 : i32, i32, i32
  }
  func.func @transform_1(%arg0: i32, %arg1: i32) -> (i32, i32) {
    %c0_i32 = arith.constant 0 : i32
    %c0_i32_0 = arith.constant 0 : i32
    %c0_i32_1 = arith.constant 0 : i32
    return %c0_i32, %c0_i32_0 : i32, i32
  }
  func.func @transform_2(%arg0: i32, %arg1: i32) -> (i32, i32) {
    %c0_i32 = arith.constant 0 : i32
    %c0_i32_0 = arith.constant 0 : i32
    %c0_i32_1 = arith.constant 0 : i32
    return %c0_i32, %c0_i32_0 : i32, i32
  }
  func.func @transform_3(%arg0: i32, %arg1: i32) -> (i32, i32) {
    %c0_i32 = arith.constant 0 : i32
    %c0_i32_0 = arith.constant 0 : i32
    %c0_i32_1 = arith.constant 0 : i32
    return %c0_i32, %c0_i32_0 : i32, i32
  }
  func.func @transform_4(%arg0: i32, %arg1: i32) -> (i32, i32) {
    %c0_i32 = arith.constant 0 : i32
    %c0_i32_0 = arith.constant 0 : i32
    %c0_i32_1 = arith.constant 0 : i32
    return %c0_i32, %c0_i32_0 : i32, i32
  }
  func.func @transform_5(%arg0: i32, %arg1: i32) -> (i32, i32, i32) {
    %c0_i32 = arith.constant 0 : i32
    %c0_i32_0 = arith.constant 0 : i32
    return %arg0, %arg1, %c0_i32 : i32, i32, i32
  }
}

</mosaic_0001>

<llo_original>
// kernel: tpu_custom_call.1
$region0: #{tpu_custom_call.1}
  #allocation0 [shape = 'u32[]', space=smem, size = 0x4, offset = 0x4, fixed_abs, tag = 'smem constant byte address 0x4 - core index']
  #allocation1 [shape = 'u32[144,128]{1,0:T(1,128)}', space=vmem, size = 0x12000, scoped, tag = 'internal scratch']
  #allocation2 [shape = 'bf16[4,8,8]{2,1,0:T(8,128)(2,1)}', space=vmem, size = 0x2000, scoped, tag = 'scratch operand']
  #allocation3 [shape = 'bf16[4,8,8]{2,1,0:T(8,128)(2,1)}', space=vmem, size = 0x2000, scoped, tag = 'scratch operand']
  #allocation4 [shape = 'bf16[4,8,8]{2,1,0:T(8,128)(2,1)}', space=vmem, size = 0x2000, scoped, tag = 'scratch operand']
  #allocation5 [shape = 'bf16[8,32]{1,0:T(8,128)(2,1)}', space=vmem, size = 0x800, scoped, tag = 'scratch operand']
  %s0 = inlined_call_operand.hbm [shape: bf16[2,8,32], index: 0, kind: input, shape index: {}]
  %s1 = inlined_call_operand.hbm [shape: bf16[32,96], index: 1, kind: input, shape index: {}]
  %s2 = inlined_call_operand.vmem [shape: f32[1,96], index: 2, kind: input, shape index: {}]
  %s3 = inlined_call_operand.hbm [shape: bf16[32,32], index: 3, kind: input, shape index: {}]
  %s4 = inlined_call_operand.vmem [shape: f32[1,32], index: 4, kind: input, shape index: {}]
  %s5 = inlined_call_operand.hbm [shape: f32[2,8,32], index: 5, kind: output, shape index: {}]
  %s6 = sld [smem:[#allocation0]]
  $region69: #{tpu_custom_call.1} parent=0
    _
  %s8 = ssub.s32 1, %s6
  %s9 = scalar_select 0, %s8, %s6
  $region1: #{tpu_custom_call.1} parent=0
    #allocation6 [shape = 'u8[4096]{0}', space=vmem, size = 0x1000, scoped, tag = 'input window, operand 0']
    #allocation7 [shape = 's32[2]{0}', space=sflag, size = 0x8, scoped, tag = 'scoped memory for tpu_custom_call.1']
    #allocation8 [shape = 's32[2]{0}', space=sflag, size = 0x8, scoped, tag = 'scoped memory for tpu_custom_call.1']
    #allocation9 [shape = 'u8[8192]{0}', space=vmem, size = 0x2000, scoped, tag = 'input window, operand 1, single buffered']
    #allocation10 [shape = 's32[1]{0}', space=sflag, size = 0x4, scoped, tag = 'scoped memory for tpu_custom_call.1']
    #allocation11 [shape = 'u8[8192]{0}', space=vmem, size = 0x2000, scoped, tag = 'input window, operand 3, single buffered']
    #allocation12 [shape = 'u8[8192]{0}', space=vmem, size = 0x2000, scoped, tag = 'output window, operand 0']
    %10 = vsyncpa [#allocation7], 0
    %s11 = scalar_lea.sflag [#allocation7], 1
    %12 = vsyncpa %s11, 0
    %13 = vsyncpa [#allocation10], 0
    %14 = vsyncpa [#allocation8], 0
    %s15 = scalar_lea.sflag [#allocation8], 1
    %16 = vsyncpa %s15, 0
    loop: start=0, step=1, limit=4
    $region2: #{tpu_custom_call.1} parent=1 // loop_pre_header
      _
    $region3: #{tpu_custom_call.1} parent=1 // loop_header
      %s18 = sphi 0, %s22
      %p19 = scmp.ge.s32.totalorder %s18, 4
      %s25 = sphi 0, %s37
      %s26 = sphi 0, %s33
      %s27 = sphi 0, %s25
      %s28 = sphi 0, %s26
      %s29 = sphi 0, %s27
      %s30 = sphi 0, %s28
      %s40 = sphi 0, %s42
      %s43 = sphi 0, %s40
      %s44 = sphi 0, %s43
      %s60 = sphi 0, %s44
      %s64 = sphi 0, %s64
      %s66 = sphi 0, %s64
      %s67 = sphi 0, %s66
      %s81 = sphi 0, %s67
      %s85 = sphi 0, %s85
      %s87 = sphi 0, %s85
      %s88 = sphi 0, %s87
      %s102 = sphi 0, %s88
      %s106 = sphi 0, %s106
      %s108 = sphi 0, %s106
      %s109 = sphi 0, %s108
      %s123 = sphi 0, %s109
      %s127 = sphi 0, %s127
      %s129 = sphi 0, %s127
      %s130 = sphi 0, %s129
      %s144 = sphi 0, %s130
      %s152 = sphi 0, %s154
      %s155 = sphi 0, %s152
      %s156 = sphi 0, %s155
      %s172 = sphi 0, %s156
    $region4: #{tpu_custom_call.1} parent=1 // loop_header_branch
      %21 = sbr.rel (%p19) target = $region8
    $region5: #{tpu_custom_call.1} parent=1 // loop_body
      %s23 = ssub.s32 %s18, 1
      %s24 = ssub.s32 %s18, 2
      %s31 = sadd.s32 1, %s26
      %p32 = scmp.ge.s32.totalorder %s31, 1
      %s33 = scalar_select %p32, 0, %s31
      %s34 = sadd.s32 1, %s25
      %s35 = scalar_select %p32, %s34, %s25
      %p36 = scmp.ge.s32.totalorder %s35, 2
      %s37 = scalar_select %p36, 0, %s35
      %s38 = ssub.s32 %s25, %s37
      %p39 = scmp.eq.s32.totalorder %s38, 0
      %s41 = sadd.s32 %s40, 1
      %s42 = scalar_select %p39, %s40, %s41
      %p45 = pneg %p39
      %p46 = scmp.eq.s32.totalorder %s18, 1
      %p47 = por %p45, %p46
      %p48 = scmp.ne.s32.totalorder %s40, %s43
      %p49 = scmp.eq.s32.totalorder %s18, 0
      %p50 = por %p48, %p49
      %p51 = scmp.ne.s32.totalorder %s40, %s43
      %p52 = scmp.eq.s32.totalorder %s23, 1
      %p53 = por %p51, %p52
      %p54 = scmp.ne.s32.totalorder %s43, %s44
      %p55 = scmp.eq.s32.totalorder %s23, 0
      %p56 = por %p54, %p55
      %p57 = scmp.ne.s32.totalorder %s43, %s44
      %p58 = scmp.eq.s32.totalorder %s24, 1
      %p59 = por %p57, %p58
      %p61 = scmp.ne.s32.totalorder %s44, %s60
      %p62 = scmp.eq.s32.totalorder %s24, 0
      %p63 = por %p61, %p62
      %s65 = sadd.s32 %s64, 1
      %p68 = scmp.eq.s32.totalorder %s18, 1
      %p69 = scmp.ne.s32.totalorder %s64, %s66
      %p70 = scmp.eq.s32.totalorder %s18, 0
      %p71 = por %p69, %p70
      %p72 = scmp.ne.s32.totalorder %s64, %s66
      %p73 = scmp.eq.s32.totalorder %s23, 1
      %p74 = por %p72, %p73
      %p75 = scmp.ne.s32.totalorder %s66, %s67
      %p76 = scmp.eq.s32.totalorder %s23, 0
      %p77 = por %p75, %p76
      %p78 = scmp.ne.s32.totalorder %s66, %s67
      %p79 = scmp.eq.s32.totalorder %s24, 1
      %p80 = por %p78, %p79
      %p82 = scmp.ne.s32.totalorder %s67, %s81
      %p83 = scmp.eq.s32.totalorder %s24, 0
      %p84 = por %p82, %p83
      %s86 = sadd.s32 %s85, 1
      %p89 = scmp.eq.s32.totalorder %s18, 1
      %p90 = scmp.ne.s32.totalorder %s85, %s87
      %p91 = scmp.eq.s32.totalorder %s18, 0
      %p92 = por %p90, %p91
      %p93 = scmp.ne.s32.totalorder %s85, %s87
      %p94 = scmp.eq.s32.totalorder %s23, 1
      %p95 = por %p93, %p94
      %p96 = scmp.ne.s32.totalorder %s87, %s88
      %p97 = scmp.eq.s32.totalorder %s23, 0
      %p98 = por %p96, %p97
      %p99 = scmp.ne.s32.totalorder %s87, %s88
      %p100 = scmp.eq.s32.totalorder %s24, 1
      %p101 = por %p99, %p100
      %p103 = scmp.ne.s32.totalorder %s88, %s102
      %p104 = scmp.eq.s32.totalorder %s24, 0
      %p105 = por %p103, %p104
      %s107 = sadd.s32 %s106, 1
      %p110 = scmp.eq.s32.totalorder %s18, 1
      %p111 = scmp.ne.s32.totalorder %s106, %s108
      %p112 = scmp.eq.s32.totalorder %s18, 0
      %p113 = por %p111, %p112
      %p114 = scmp.ne.s32.totalorder %s106, %s108
      %p115 = scmp.eq.s32.totalorder %s23, 1
      %p116 = por %p114, %p115
      %p117 = scmp.ne.s32.totalorder %s108, %s109
      %p118 = scmp.eq.s32.totalorder %s23, 0
      %p119 = por %p117, %p118
      %p120 = scmp.ne.s32.totalorder %s108, %s109
      %p121 = scmp.eq.s32.totalorder %s24, 1
      %p122 = por %p120, %p121
      %p124 = scmp.ne.s32.totalorder %s109, %s123
      %p125 = scmp.eq.s32.totalorder %s24, 0
      %p126 = por %p124, %p125
      %s128 = sadd.s32 %s127, 1
      %p131 = scmp.eq.s32.totalorder %s18, 1
      %p132 = scmp.ne.s32.totalorder %s127, %s129
      %p133 = scmp.eq.s32.totalorder %s18, 0
      %p134 = por %p132, %p133
      %p135 = scmp.ne.s32.totalorder %s127, %s129
      %p136 = scmp.eq.s32.totalorder %s23, 1
      %p137 = por %p135, %p136
      %p138 = scmp.ne.s32.totalorder %s129, %s130
      %p139 = scmp.eq.s32.totalorder %s23, 0
      %p140 = por %p138, %p139
      %p141 = scmp.ne.s32.totalorder %s129, %s130
      %p142 = scmp.eq.s32.totalorder %s24, 1
      %p143 = por %p141, %p142
      %p145 = scmp.ne.s32.totalorder %s130, %s144
      %p146 = scmp.eq.s32.totalorder %s24, 0
      %p147 = por %p145, %p146
      %s148 = ssub.s32 %s25, %s37
      %s149 = ssub.s32 %s26, %s33
      %s150 = sor.u32 %s148, %s149
      %p151 = scmp.eq.s32.totalorder %s150, 0
      %s153 = sadd.s32 %s152, 1
      %s154 = scalar_select %p151, %s152, %s153
      %p157 = pneg %p151
      %p158 = scmp.eq.s32.totalorder %s18, 1
      %p159 = por %p157, %p158
      %p160 = scmp.ne.s32.totalorder %s152, %s155
      %p161 = scmp.eq.s32.totalorder %s18, 0
      %p162 = por %p160, %p161
      %p163 = scmp.ne.s32.totalorder %s152, %s155
      %p164 = scmp.eq.s32.totalorder %s23, 1
      %p165 = por %p163, %p164
      %p166 = scmp.ne.s32.totalorder %s155, %s156
      %p167 = scmp.eq.s32.totalorder %s23, 0
      %p168 = por %p166, %p167
      %p169 = scmp.ne.s32.totalorder %s155, %s156
      %p170 = scmp.eq.s32.totalorder %s24, 1
      %p171 = por %p169, %p170
      %p173 = scmp.ne.s32.totalorder %s156, %s172
      %p174 = scmp.eq.s32.totalorder %s24, 0
      %p175 = por %p173, %p174
      %p176 = scmp.le.s32.totalorder 1, %s18
      %p177 = scmp.lt.s32.totalorder %s18, 3
      %p178 = pnand %p176, %p177
      %p179 = pneg %p178
      // Predicated region
      $region9: #{tpu_custom_call.1} parent=5 // pred_check
        _
      $region10: #{tpu_custom_call.1} parent=5 // pred_check_branch
        %181 = sbr.rel (%p178) target = $region12
      $region11: #{tpu_custom_call.1} parent=5 // pred_region
        %s182 = ssub.s32 %s18, 1
        // Predicated region
        $region13: #{tpu_custom_call.1} parent=11 // pred_check
          %p183 = pneg %p77
        $region14: #{tpu_custom_call.1} parent=11 // pred_check_branch
          %185 = sbr.rel (%p183) target = $region16
        $region15: #{tpu_custom_call.1} parent=11 // pred_region
          %s187 = ssub.s32 256, 256
          %188 = vsyncadd [#allocation10], %s187
          %s189 = sshll.u32 [#allocation9], 4
          %s190 = int_to_ptr.vmem [resolvable:$true] %s189
          %195 = dma.hbm_to_vmem [thread:$0]  %s1, 256, %s190, [#allocation10], 64, 64, 4
        $region16: #{tpu_custom_call.1} parent=11 // pred_fallthru
          _
        // Predicated region
        $region17: #{tpu_custom_call.1} parent=11 // pred_check
          %p196 = pneg %p98
        $region18: #{tpu_custom_call.1} parent=11 // pred_check_branch
          %198 = sbr.rel (%p196) target = $region20
        $region19: #{tpu_custom_call.1} parent=11 // pred_region
          _
        $region20: #{tpu_custom_call.1} parent=11 // pred_fallthru
          _
        // Predicated region
        $region21: #{tpu_custom_call.1} parent=11 // pred_check
          %p199 = pneg %p119
        $region22: #{tpu_custom_call.1} parent=11 // pred_check_branch
          %201 = sbr.rel (%p199) target = $region24
        $region23: #{tpu_custom_call.1} parent=11 // pred_region
          %s203 = ssub.s32 256, 256
          %204 = vsyncadd [#allocation10], %s203
          %s205 = sshll.u32 [#allocation11], 4
          %s206 = int_to_ptr.vmem [resolvable:$true] %s205
          %211 = dma.hbm_to_vmem [thread:$0]  %s3, 256, %s206, [#allocation10], 64, 64, 4
        $region24: #{tpu_custom_call.1} parent=11 // pred_fallthru
          _
        // Predicated region
        $region25: #{tpu_custom_call.1} parent=11 // pred_check
          %p212 = pneg %p140
        $region26: #{tpu_custom_call.1} parent=11 // pred_check_branch
          %214 = sbr.rel (%p212) target = $region28
        $region27: #{tpu_custom_call.1} parent=11 // pred_region
          _
        $region28: #{tpu_custom_call.1} parent=11 // pred_fallthru
          _
      $region12: #{tpu_custom_call.1} parent=5 // pred_fallthru
        _
      %p215 = scmp.lt.s32.totalorder %s18, 2
      // Predicated region
      $region29: #{tpu_custom_call.1} parent=5 // pred_check
        %p216 = pneg %p215
      $region30: #{tpu_custom_call.1} parent=5 // pred_check_branch
        %218 = sbr.rel (%p216) target = $region32
      $region31: #{tpu_custom_call.1} parent=5 // pred_region
        // Predicated region
        $region33: #{tpu_custom_call.1} parent=31 // pred_check
          %p219 = pneg %p50
        $region34: #{tpu_custom_call.1} parent=31 // pred_check_branch
          %221 = sbr.rel (%p219) target = $region36
        $region35: #{tpu_custom_call.1} parent=31 // pred_region
          %s222 = sand.u32 %s40, 1
          %s223 = scalar_lea.sflag [#allocation7], %s222
          %s224 = sand.u32 %s40, 1
          %s225 = smul.addr %s224, 4
          %s226 = scalar_lea.vmem [#allocation6], %s225
          %s228 = ssub.s32 64, 64
          %229 = vsyncadd %s223, %s228
          %s230 = smul.addr %s25, 64
          %s231 = scalar_lea.hbm %s0, %s230
          %s233 = sshll.u32 %s226, 4
          %s234 = int_to_ptr.vmem [resolvable:$true] %s233
          %236 = dma.hbm_to_vmem [thread:$0]  %s231, 64, %s234, %s223
        $region36: #{tpu_custom_call.1} parent=31 // pred_fallthru
          _
      $region32: #{tpu_custom_call.1} parent=5 // pred_fallthru
        _
      %p237 = scmp.le.s32.totalorder 1, %s18
      %p238 = scmp.lt.s32.totalorder %s18, 3
      %p239 = pnand %p237, %p238
      %p240 = pneg %p239
      // Predicated region
      $region37: #{tpu_custom_call.1} parent=5 // pred_check
        _
      $region38: #{tpu_custom_call.1} parent=5 // pred_check_branch
        %242 = sbr.rel (%p239) target = $region40
      $region39: #{tpu_custom_call.1} parent=5 // pred_region
        %s243 = ssub.s32 %s18, 1
        %s244 = sand.u32 %s43, 1
        %s245 = scalar_lea.sflag [#allocation7], %s244
        %s246 = sand.u32 %s43, 1
        %s247 = smul.addr %s246, 4
        %s248 = scalar_lea.vmem [#allocation6], %s247
        // Predicated region
        $region41: #{tpu_custom_call.1} parent=39 // pred_check
          %p249 = pneg %p56
        $region42: #{tpu_custom_call.1} parent=39 // pred_check_branch
          %251 = sbr.rel (%p249) target = $region44
        $region43: #{tpu_custom_call.1} parent=39 // pred_region
          %252 = dma.done %s245, 64
        $region44: #{tpu_custom_call.1} parent=39 // pred_fallthru
          _
        // Predicated region
        $region45: #{tpu_custom_call.1} parent=39 // pred_check
          %p253 = pneg %p77
        $region46: #{tpu_custom_call.1} parent=39 // pred_check_branch
          %255 = sbr.rel (%p253) target = $region48
        $region47: #{tpu_custom_call.1} parent=39 // pred_region
          %256 = dma.done [#allocation10], 256
        $region48: #{tpu_custom_call.1} parent=39 // pred_fallthru
          _
        // Predicated region
        $region49: #{tpu_custom_call.1} parent=39 // pred_check
          %p257 = pneg %p119
        $region50: #{tpu_custom_call.1} parent=39 // pred_check_branch
          %259 = sbr.rel (%p257) target = $region52
        $region51: #{tpu_custom_call.1} parent=39 // pred_region
          %260 = dma.done [#allocation10], 256
        $region52: #{tpu_custom_call.1} parent=39 // pred_fallthru
          _
        %s261 = sand.u32 %s43, 1
        %s262 = scalar_lea.sflag [#allocation7], %s261
        %s263 = sand.u32 %s43, 1
        %s264 = smul.addr %s263, 4
        %s265 = scalar_lea.vmem [#allocation6], %s264
        %p266 = pneg %p56
        %p267 = pneg %p53
        %p268 = pneg %p77
        %p269 = pneg %p74
        %p270 = pneg %p98
        %p271 = pneg %p95
        %p272 = pneg %p119
        %p273 = pneg %p116
        %p274 = pneg %p140
        %p275 = pneg %p137
        %p276 = pneg %p168
        %p277 = pneg %p165
        %s278 = sand.u32 %s155, 1
        %s279 = scalar_lea.sflag [#allocation8], %s278
        %s280 = sand.u32 %s155, 1
        %s281 = smul.addr %s280, 8
        %s282 = scalar_lea.vmem [#allocation12], %s281
        %p284 = scmp.eq.s32.totalorder %s28, 0
        // Predicated region
        $region53: #{tpu_custom_call.1} parent=39 // pred_check
          %p285 = pneg %p284
        $region54: #{tpu_custom_call.1} parent=39 // pred_check_branch
          %287 = sbr.rel (%p285) target = $region56
        $region55: #{tpu_custom_call.1} parent=39 // pred_region
          %v288 = vld [vmem:[%s248] sm:$0xf]
          %v289 = vld [vmem:[#allocation9] sm:$0xf]
          %v290 = vld [vmem:[#allocation9 + $0x4] sm:$0xf]
          %v291 = vld [vmem:[#allocation9 + $0x8] sm:$0xf]
          %v292 = vld [vmem:[#allocation9 + $0xc] sm:$0xf]
          %v293 = vld [vmem:[%s2] sm:$0x1]
          %v295 = vlaneseq
          %v296 = vshrl.u32 %v295, 7
          %v297 = vsub.s32 0, %v296
          %v298 = vrot.slane %v293, %v297
          %v303 = vunpack.c.l.b16 %v289
          %v304 = vunpack.c.l.b16 %v290
          %v305 = vunpack.c.l.b16 %v291
          %v306 = vunpack.c.l.b16 %v292
          %v307 = vpack.c.b16 %v304, %v303
          %v308 = vpack.c.b16 %v306, %v305
          %309 = vrot.lane.b32.xlu0 %v307, 96
          %v310 = vpop.permute.xlu0 %309
          %311 = vrot.lane.b32.xlu0 %v308, 96
          %v312 = vpop.permute.xlu0 %311
          %315 = vrot.lane.b32.xlu0 %v298, 96
          %v316 = vpop.permute.xlu0 %315
          %vm318 = vcmask 261120
          %v320 = vsel %vm318, %v288, 0
          %322 = vmatprep.subr.bf16.mxu0 0
          %323 = vmatpush1.bf16.msra.mxu0 %v310
          %324 = vmatprep.subr.bf16.mxu0 0
          %325 = vmatpush1.bf16.msra.mxu0 %v312
          %326 = vmatprep.subr.bf16.mxu0 0
          %327 = vmatpush1.bf16.msra.mxu0 0
          %328 = vmatprep.subr.bf16.mxu0 0
          %329 = vmatpush1.bf16.msra.mxu0 0
          %330 = vmatprep.subr.bf16.mxu0 0
          %331 = vmatpush1.bf16.msra.mxu0 0
          %332 = vmatprep.subr.bf16.mxu0 0
          %333 = vmatpush1.bf16.msra.mxu0 0
          %334 = vmatprep.subr.bf16.mxu0 0
          %335 = vmatpush1.bf16.msra.mxu0 0
          %336 = vmatprep.subr.bf16.mxu0 0
          %337 = vmatpush1.bf16.msra.mxu0 0
          %338 = vmatprep.subr.bf16.mxu0 0
          %339 = vmatpush1.bf16.msra.mxu0 0
          %340 = vmatprep.subr.bf16.mxu0 0
          %341 = vmatpush1.bf16.msra.mxu0 0
          %342 = vmatprep.subr.bf16.mxu0 0
          %343 = vmatpush1.bf16.msra.mxu0 0
          %344 = vmatprep.subr.bf16.mxu0 0
          %345 = vmatpush1.bf16.msra.mxu0 0
          %346 = vmatprep.subr.bf16.mxu0 0
          %347 = vmatpush1.bf16.msra.mxu0 0
          %348 = vmatprep.subr.bf16.mxu0 0
          %349 = vmatpush1.bf16.msra.mxu0 0
          %350 = vmatprep.subr.bf16.mxu0 0
          %351 = vmatpush1.bf16.msra.mxu0 0
          %352 = vmatprep.subr.bf16.mxu0 0
          %353 = vmatpush1.bf16.msra.mxu0 0
          %354 = vmatprep.mubr.bf16.mxu0 0
          %355 = vmatmul.mubr.bf16.gmra.mrb[0].mxu0 %v320
          %v356 = vpop.f32.mrb[0].mxu0
          %v357 = vadd.f32 %v316, %v356
          %v358 = vpop.f32.mrb[0].mxu0
          %v359 = vpop.f32.mrb[0].mxu0
          %v360 = vpop.f32.mrb[0].mxu0
          %361 = vdwg.mxu0
          %v362 = vpack.c.bf16 %v357, %v357
          %vm363 = vcmask 60416
          %364 = vst.msk [vmem:[#allocation3] sm:$0xf] %vm363, %v362
          %v366 = vunpack.c.l.b16 %v362
          %v367 = vpack.c.b16 %v366, %v366
          %368 = vrot.lane.b32.xlu0 %v367, 96
          %v369 = vpop.permute.xlu0 %368
          %371 = vst.msk [vmem:[#allocation4] sm:$0xf] %vm363, %v369
          %372 = vrot.lane.b32.xlu0 %v367, 120
          %v373 = vpop.permute.xlu0 %372
          %s375 = scalar_lea.vmem [#allocation3], 4
          %376 = vst.msk [vmem:[%s375] sm:$0xf] %vm363, %v373
          %377 = vrot.lane.b32.xlu0 %v367, 88
          %v378 = vpop.permute.xlu0 %377
          %s380 = scalar_lea.vmem [#allocation4], 4
          %381 = vst.msk [vmem:[%s380] sm:$0xf] %vm363, %v378
          %382 = vrot.lane.b32.xlu0 %v367, 112
          %v383 = vpop.permute.xlu0 %382
          %s385 = scalar_lea.vmem [#allocation3], 8
          %386 = vst.msk [vmem:[%s385] sm:$0xf] %vm363, %v383
          %387 = vrot.lane.b32.xlu0 %v367, 80
          %v388 = vpop.permute.xlu0 %387
          %s390 = scalar_lea.vmem [#allocation4], 8
          %391 = vst.msk [vmem:[%s390] sm:$0xf] %vm363, %v388
          %392 = vrot.lane.b32.xlu0 %v367, 104
          %v393 = vpop.permute.xlu0 %392
          %s395 = scalar_lea.vmem [#allocation3], 12
          %396 = vst.msk [vmem:[%s395] sm:$0xf] %vm363, %v393
          %397 = vrot.lane.b32.xlu0 %v367, 72
          %v398 = vpop.permute.xlu0 %397
          %s400 = scalar_lea.vmem [#allocation4], 12
          %401 = vst.msk [vmem:[%s400] sm:$0xf] %vm363, %v398
        $region56: #{tpu_custom_call.1} parent=39 // pred_fallthru
          _
        %s402 = smul.u32 %s28, 8
        %s403 = sshra.s32 %s402, 3
        %s404 = sand.u32 %s402, 7
        %s405 = smul.addr %s403, 4
        %s406 = scalar_lea.vmem %s248, %s405 [#allocation6]
        %v407 = vld [vmem:[%s406] sm:$0xf]
        %v408 = vld [vmem:[#allocation9] sm:$0xf]
        %v409 = vld [vmem:[#allocation9 + $0x4] sm:$0xf]
        %v410 = vld [vmem:[#allocation9 + $0x8] sm:$0xf]
        %v411 = vld [vmem:[#allocation9 + $0xc] sm:$0xf]
        %v412 = vld [vmem:[%s2] sm:$0x1]
        %v414 = vlaneseq
        %v415 = vshrl.u32 %v414, 7
        %v416 = vsub.s32 0, %v415
        %v417 = vrot.slane %v412, %v416
        %v423 = vunpack.c.l.b16 %v408
        %v424 = vunpack.c.l.b16 %v409
        %v425 = vunpack.c.l.b16 %v410
        %v426 = vunpack.c.l.b16 %v411
        %v427 = vpack.c.b16 %v424, %v423
        %v428 = vpack.c.b16 %v426, %v425
        %vm431 = vcmask 261120
        %v433 = vsel %vm431, %v407, 0
        %435 = vmatprep.subr.bf16.mxu0 0
        %436 = vmatpush1.bf16.msra.mxu0 %v427
        %437 = vmatprep.subr.bf16.mxu0 0
        %438 = vmatpush1.bf16.msra.mxu0 %v428
        %439 = vmatprep.subr.bf16.mxu0 0
        %440 = vmatpush1.bf16.msra.mxu0 0
        %441 = vmatprep.subr.bf16.mxu0 0
        %442 = vmatpush1.bf16.msra.mxu0 0
        %443 = vmatprep.subr.bf16.mxu0 0
        %444 = vmatpush1.bf16.msra.mxu0 0
        %445 = vmatprep.subr.bf16.mxu0 0
        %446 = vmatpush1.bf16.msra.mxu0 0
        %447 = vmatprep.subr.bf16.mxu0 0
        %448 = vmatpush1.bf16.msra.mxu0 0
        %449 = vmatprep.subr.bf16.mxu0 0
        %450 = vmatpush1.bf16.msra.mxu0 0
        %451 = vmatprep.subr.bf16.mxu0 0
        %452 = vmatpush1.bf16.msra.mxu0 0
        %453 = vmatprep.subr.bf16.mxu0 0
        %454 = vmatpush1.bf16.msra.mxu0 0
        %455 = vmatprep.subr.bf16.mxu0 0
        %456 = vmatpush1.bf16.msra.mxu0 0
        %457 = vmatprep.subr.bf16.mxu0 0
        %458 = vmatpush1.bf16.msra.mxu0 0
        %459 = vmatprep.subr.bf16.mxu0 0
        %460 = vmatpush1.bf16.msra.mxu0 0
        %461 = vmatprep.subr.bf16.mxu0 0
        %462 = vmatpush1.bf16.msra.mxu0 0
        %463 = vmatprep.subr.bf16.mxu0 0
        %464 = vmatpush1.bf16.msra.mxu0 0
        %465 = vmatprep.subr.bf16.mxu0 0
        %466 = vmatpush1.bf16.msra.mxu0 0
        %467 = vmatprep.mubr.bf16.mxu0 0
        %468 = vmatmul.mubr.bf16.gmra.mrb[0].mxu0 %v433
        %v469 = vpop.f32.mrb[0].mxu0
        %v470 = vadd.f32 %v417, %v469
        %v471 = vpop.f32.mrb[0].mxu0
        %v472 = vpop.f32.mrb[0].mxu0
        %v473 = vpop.f32.mrb[0].mxu0
        %474 = vdwg.mxu0
        %v475 = vpack.c.bf16 %v470, %v470
        %vm476 = vcmask 60416
        %477 = vst.msk [vmem:[#allocation2] sm:$0xf] %vm476, %v475
        %v479 = vunpack.c.l.b16 %v475
        %v480 = vpack.c.b16 %v479, %v479
        %481 = vrot.lane.b32.xlu0 %v480, 120
        %v482 = vpop.permute.xlu0 %481
        %s484 = scalar_lea.vmem [#allocation2], 4
        %485 = vst.msk [vmem:[%s484] sm:$0xf] %vm476, %v482
        %486 = vrot.lane.b32.xlu0 %v480, 112
        %v487 = vpop.permute.xlu0 %486
        %s489 = scalar_lea.vmem [#allocation2], 8
        %490 = vst.msk [vmem:[%s489] sm:$0xf] %vm476, %v487
        %491 = vrot.lane.b32.xlu0 %v480, 104
        %v492 = vpop.permute.xlu0 %491
        %s494 = scalar_lea.vmem [#allocation2], 12
        %495 = vst.msk [vmem:[%s494] sm:$0xf] %vm476, %v492
        %v496 = vld [vmem:[#allocation2] sm:$0xf]
        %v497 = vld [vmem:[#allocation2 + $0x4] sm:$0xf]
        %v498 = vld [vmem:[#allocation2 + $0x8] sm:$0xf]
        %v499 = vld [vmem:[#allocation2 + $0xc] sm:$0xf]
        %v500 = vld [vmem:[#allocation3] sm:$0xf]
        %v501 = vld [vmem:[#allocation3 + $0x4] sm:$0xf]
        %v502 = vld [vmem:[#allocation3 + $0x8] sm:$0xf]
        %v503 = vld [vmem:[#allocation3 + $0xc] sm:$0xf]
        %vm504 = vcmask 64512
        %v506 = vsel %vm504, %v496, 0
        %v509 = vsel %vm504, %v500, 0
        %511 = vmatprep.subr.bf16.mxu0 0
        %512 = vmatpush1.bf16.xpose.msra.mxu0 %v509
        %513 = vmatprep.subr.bf16.mxu0 0
        %514 = vmatpush1.bf16.xpose.msra.mxu0 0
        %515 = vmatprep.subr.bf16.mxu0 0
        %516 = vmatpush1.bf16.xpose.msra.mxu0 0
        %517 = vmatprep.subr.bf16.mxu0 0
        %518 = vmatpush1.bf16.xpose.msra.mxu0 0
        %519 = vmatprep.subr.bf16.mxu0 0
        %520 = vmatpush1.bf16.xpose.msra.mxu0 0
        %521 = vmatprep.subr.bf16.mxu0 0
        %522 = vmatpush1.bf16.xpose.msra.mxu0 0
        %523 = vmatprep.subr.bf16.mxu0 0
        %524 = vmatpush1.bf16.xpose.msra.mxu0 0
        %525 = vmatprep.subr.bf16.mxu0 0
        %526 = vmatpush1.bf16.xpose.msra.mxu0 0
        %527 = vmatprep.subr.bf16.mxu0 0
        %528 = vmatpush1.bf16.xpose.msra.mxu0 0
        %529 = vmatprep.subr.bf16.mxu0 0
        %530 = vmatpush1.bf16.xpose.msra.mxu0 0
        %531 = vmatprep.subr.bf16.mxu0 0
        %532 = vmatpush1.bf16.xpose.msra.mxu0 0
        %533 = vmatprep.subr.bf16.mxu0 0
        %534 = vmatpush1.bf16.xpose.msra.mxu0 0
        %535 = vmatprep.subr.bf16.mxu0 0
        %536 = vmatpush1.bf16.xpose.msra.mxu0 0
        %537 = vmatprep.subr.bf16.mxu0 0
        %538 = vmatpush1.bf16.xpose.msra.mxu0 0
        %539 = vmatprep.subr.bf16.mxu0 0
        %540 = vmatpush1.bf16.xpose.msra.mxu0 0
        %541 = vmatprep.subr.bf16.mxu0 0
        %542 = vmatpush1.bf16.xpose.msra.mxu0 0
        %543 = vmatprep.mubr.bf16.mxu0 0
        %544 = vmatmul.mubr.bf16.gmra.mrb[0].mxu0 %v506
        %v545 = vpop.f32.mrb[0].mxu0
        %v546 = vadd.f32 0.0, %v545
        %v547 = vpop.f32.mrb[0].mxu0
        %v548 = vpop.f32.mrb[0].mxu0
        %v549 = vpop.f32.mrb[0].mxu0
        %550 = vdwg.mxu0
        %v552 = vsel %vm504, %v497, 0
        %v555 = vsel %vm504, %v501, 0
        %557 = vmatprep.subr.bf16.mxu0 0
        %558 = vmatpush1.bf16.xpose.msra.mxu0 %v555
        %559 = vmatprep.subr.bf16.mxu0 0
        %560 = vmatpush1.bf16.xpose.msra.mxu0 0
        %561 = vmatprep.subr.bf16.mxu0 0
        %562 = vmatpush1.bf16.xpose.msra.mxu0 0
        %563 = vmatprep.subr.bf16.mxu0 0
        %564 = vmatpush1.bf16.xpose.msra.mxu0 0
        %565 = vmatprep.subr.bf16.mxu0 0
        %566 = vmatpush1.bf16.xpose.msra.mxu0 0
        %567 = vmatprep.subr.bf16.mxu0 0
        %568 = vmatpush1.bf16.xpose.msra.mxu0 0
        %569 = vmatprep.subr.bf16.mxu0 0
        %570 = vmatpush1.bf16.xpose.msra.mxu0 0
        %571 = vmatprep.subr.bf16.mxu0 0
        %572 = vmatpush1.bf16.xpose.msra.mxu0 0
        %573 = vmatprep.subr.bf16.mxu0 0
        %574 = vmatpush1.bf16.xpose.msra.mxu0 0
        %575 = vmatprep.subr.bf16.mxu0 0
        %576 = vmatpush1.bf16.xpose.msra.mxu0 0
        %577 = vmatprep.subr.bf16.mxu0 0
        %578 = vmatpush1.bf16.xpose.msra.mxu0 0
        %579 = vmatprep.subr.bf16.mxu0 0
        %580 = vmatpush1.bf16.xpose.msra.mxu0 0
        %581 = vmatprep.subr.bf16.mxu0 0
        %582 = vmatpush1.bf16.xpose.msra.mxu0 0
        %583 = vmatprep.subr.bf16.mxu0 0
        %584 = vmatpush1.bf16.xpose.msra.mxu0 0
        %585 = vmatprep.subr.bf16.mxu0 0
        %586 = vmatpush1.bf16.xpose.msra.mxu0 0
        %587 = vmatprep.subr.bf16.mxu0 0
        %588 = vmatpush1.bf16.xpose.msra.mxu0 0
        %589 = vmatprep.mubr.bf16.mxu0 0
        %590 = vmatmul.mubr.bf16.gmra.mrb[0].mxu0 %v552
        %v591 = vpop.f32.mrb[0].mxu0
        %v592 = vadd.f32 0.0, %v591
        %v593 = vpop.f32.mrb[0].mxu0
        %v594 = vpop.f32.mrb[0].mxu0
        %v595 = vpop.f32.mrb[0].mxu0
        %596 = vdwg.mxu0
        %v598 = vsel %vm504, %v498, 0
        %v601 = vsel %vm504, %v502, 0
        %603 = vmatprep.subr.bf16.mxu0 0
        %604 = vmatpush1.bf16.xpose.msra.mxu0 %v601
        %605 = vmatprep.subr.bf16.mxu0 0
        %606 = vmatpush1.bf16.xpose.msra.mxu0 0
        %607 = vmatprep.subr.bf16.mxu0 0
        %608 = vmatpush1.bf16.xpose.msra.mxu0 0
        %609 = vmatprep.subr.bf16.mxu0 0
        %610 = vmatpush1.bf16.xpose.msra.mxu0 0
        %611 = vmatprep.subr.bf16.mxu0 0
        %612 = vmatpush1.bf16.xpose.msra.mxu0 0
        %613 = vmatprep.subr.bf16.mxu0 0
        %614 = vmatpush1.bf16.xpose.msra.mxu0 0
        %615 = vmatprep.subr.bf16.mxu0 0
        %616 = vmatpush1.bf16.xpose.msra.mxu0 0
        %617 = vmatprep.subr.bf16.mxu0 0
        %618 = vmatpush1.bf16.xpose.msra.mxu0 0
        %619 = vmatprep.subr.bf16.mxu0 0
        %620 = vmatpush1.bf16.xpose.msra.mxu0 0
        %621 = vmatprep.subr.bf16.mxu0 0
        %622 = vmatpush1.bf16.xpose.msra.mxu0 0
        %623 = vmatprep.subr.bf16.mxu0 0
        %624 = vmatpush1.bf16.xpose.msra.mxu0 0
        %625 = vmatprep.subr.bf16.mxu0 0
        %626 = vmatpush1.bf16.xpose.msra.mxu0 0
        %627 = vmatprep.subr.bf16.mxu0 0
        %628 = vmatpush1.bf16.xpose.msra.mxu0 0
        %629 = vmatprep.subr.bf16.mxu0 0
        %630 = vmatpush1.bf16.xpose.msra.mxu0 0
        %631 = vmatprep.subr.bf16.mxu0 0
        %632 = vmatpush1.bf16.xpose.msra.mxu0 0
        %633 = vmatprep.subr.bf16.mxu0 0
        %634 = vmatpush1.bf16.xpose.msra.mxu0 0
        %635 = vmatprep.mubr.bf16.mxu0 0
        %636 = vmatmul.mubr.bf16.gmra.mrb[0].mxu0 %v598
        %v637 = vpop.f32.mrb[0].mxu0
        %v638 = vadd.f32 0.0, %v637
        %v639 = vpop.f32.mrb[0].mxu0
        %v640 = vpop.f32.mrb[0].mxu0
        %v641 = vpop.f32.mrb[0].mxu0
        %642 = vdwg.mxu0
        %v644 = vsel %vm504, %v499, 0
        %v647 = vsel %vm504, %v503, 0
        %649 = vmatprep.subr.bf16.mxu0 0
        %650 = vmatpush1.bf16.xpose.msra.mxu0 %v647
        %651 = vmatprep.subr.bf16.mxu0 0
        %652 = vmatpush1.bf16.xpose.msra.mxu0 0
        %653 = vmatprep.subr.bf16.mxu0 0
        %654 = vmatpush1.bf16.xpose.msra.mxu0 0
        %655 = vmatprep.subr.bf16.mxu0 0
        %656 = vmatpush1.bf16.xpose.msra.mxu0 0
        %657 = vmatprep.subr.bf16.mxu0 0
        %658 = vmatpush1.bf16.xpose.msra.mxu0 0
        %659 = vmatprep.subr.bf16.mxu0 0
        %660 = vmatpush1.bf16.xpose.msra.mxu0 0
        %661 = vmatprep.subr.bf16.mxu0 0
        %662 = vmatpush1.bf16.xpose.msra.mxu0 0
        %663 = vmatprep.subr.bf16.mxu0 0
        %664 = vmatpush1.bf16.xpose.msra.mxu0 0
        %665 = vmatprep.subr.bf16.mxu0 0
        %666 = vmatpush1.bf16.xpose.msra.mxu0 0
        %667 = vmatprep.subr.bf16.mxu0 0
        %668 = vmatpush1.bf16.xpose.msra.mxu0 0
        %669 = vmatprep.subr.bf16.mxu0 0
        %670 = vmatpush1.bf16.xpose.msra.mxu0 0
        %671 = vmatprep.subr.bf16.mxu0 0
        %672 = vmatpush1.bf16.xpose.msra.mxu0 0
        %673 = vmatprep.subr.bf16.mxu0 0
        %674 = vmatpush1.bf16.xpose.msra.mxu0 0
        %675 = vmatprep.subr.bf16.mxu0 0
        %676 = vmatpush1.bf16.xpose.msra.mxu0 0
        %677 = vmatprep.subr.bf16.mxu0 0
        %678 = vmatpush1.bf16.xpose.msra.mxu0 0
        %679 = vmatprep.subr.bf16.mxu0 0
        %680 = vmatpush1.bf16.xpose.msra.mxu0 0
        %681 = vmatprep.mubr.bf16.mxu0 0
        %682 = vmatmul.mubr.bf16.gmra.mrb[0].mxu0 %v644
        %v683 = vpop.f32.mrb[0].mxu0
        %v684 = vadd.f32 0.0, %v683
        %v685 = vpop.f32.mrb[0].mxu0
        %v686 = vpop.f32.mrb[0].mxu0
        %v687 = vpop.f32.mrb[0].mxu0
        %688 = vdwg.mxu0
        %v689 = vsel %vm504, %v546, -inf
        %690 = vmax.xlane.f32.xlu0 %v689
        %v691 = vpop.xlane.xlu0 %690
        %v692 = vsel %vm504, %v592, -inf
        %693 = vmax.xlane.f32.xlu0 %v692
        %v694 = vpop.xlane.xlu0 %693
        %v695 = vsel %vm504, %v638, -inf
        %696 = vmax.xlane.f32.xlu0 %v695
        %v697 = vpop.xlane.xlu0 %696
        %v698 = vsel %vm504, %v684, -inf
        %699 = vmax.xlane.f32.xlu0 %v698
        %v700 = vpop.xlane.xlu0 %699
        %v701 = vsub.f32 %v546, %v691
        %v702 = vsub.f32 %v592, %v694
        %v703 = vsub.f32 %v638, %v697
        %v704 = vsub.f32 %v684, %v700
        %v705 = vpack.c.bf16 %v701, %v701
        %v706 = vpack.c.bf16 %v702, %v702
        %v707 = vpack.c.bf16 %v703, %v703
        %v708 = vpack.c.bf16 %v704, %v704
        %v710 = vmul.bf16 %v705, 1069105081
        %v711 = vpow.bf16.pop %v710
        %v713 = vmul.bf16 %v706, 1069105081
        %v714 = vpow.bf16.pop %v713
        %v716 = vmul.bf16 %v707, 1069105081
        %v717 = vpow.bf16.pop %v716
        %v719 = vmul.bf16 %v708, 1069105081
        %v720 = vpow.bf16.pop %v719
        %v721 = vunpack.c.l.bf16 %v711
        %v722 = vunpack.c.l.bf16 %v714
        %v723 = vunpack.c.l.bf16 %v717
        %v724 = vunpack.c.l.bf16 %v720
        %v725 = vsel %vm504, %v721, 0.0
        %726 = vadd.xlane.f32.xlu0 %v725
        %v727 = vpop.xlane.xlu0 %726
        %v728 = vsel %vm504, %v722, 0.0
        %729 = vadd.xlane.f32.xlu0 %v728
        %v730 = vpop.xlane.xlu0 %729
        %v731 = vsel %vm504, %v723, 0.0
        %732 = vadd.xlane.f32.xlu0 %v731
        %v733 = vpop.xlane.xlu0 %732
        %v734 = vsel %vm504, %v724, 0.0
        %735 = vadd.xlane.f32.xlu0 %v734
        %v736 = vpop.xlane.xlu0 %735
        %v737 = vrcp.pop %v727
        %v738 = vrcp.pop %v730
        %v739 = vrcp.pop %v733
        %v740 = vrcp.pop %v736
        %v741 = vpack.c.bf16 %v737, %v737
        %v742 = vpack.c.bf16 %v738, %v738
        %v743 = vpack.c.bf16 %v739, %v739
        %v744 = vpack.c.bf16 %v740, %v740
        %v745 = vmul.bf16 %v711, %v741
        %v746 = vmul.bf16 %v714, %v742
        %v747 = vmul.bf16 %v717, %v743
        %v748 = vmul.bf16 %v720, %v744
        %v749 = vld [vmem:[#allocation4] sm:$0xf]
        %v750 = vld [vmem:[#allocation4 + $0x4] sm:$0xf]
        %v751 = vld [vmem:[#allocation4 + $0x8] sm:$0xf]
        %v752 = vld [vmem:[#allocation4 + $0xc] sm:$0xf]
        %v754 = vsel %vm504, %v745, 0
        %vm756 = vcmask 1043456
        %v758 = vsel %vm756, %v749, 0
        %760 = vmatprep.subr.bf16.mxu0 0
        %761 = vmatpush1.bf16.msra.mxu0 %v758
        %762 = vmatprep.subr.bf16.mxu0 0
        %763 = vmatpush1.bf16.msra.mxu0 0
        %764 = vmatprep.subr.bf16.mxu0 0
        %765 = vmatpush1.bf16.msra.mxu0 0
        %766 = vmatprep.subr.bf16.mxu0 0
        %767 = vmatpush1.bf16.msra.mxu0 0
        %768 = vmatprep.subr.bf16.mxu0 0
        %769 = vmatpush1.bf16.msra.mxu0 0
        %770 = vmatprep.subr.bf16.mxu0 0
        %771 = vmatpush1.bf16.msra.mxu0 0
        %772 = vmatprep.subr.bf16.mxu0 0
        %773 = vmatpush1.bf16.msra.mxu0 0
        %774 = vmatprep.subr.bf16.mxu0 0
        %775 = vmatpush1.bf16.msra.mxu0 0
        %776 = vmatprep.subr.bf16.mxu0 0
        %777 = vmatpush1.bf16.msra.mxu0 0
        %778 = vmatprep.subr.bf16.mxu0 0
        %779 = vmatpush1.bf16.msra.mxu0 0
        %780 = vmatprep.subr.bf16.mxu0 0
        %781 = vmatpush1.bf16.msra.mxu0 0
        %782 = vmatprep.subr.bf16.mxu0 0
        %783 = vmatpush1.bf16.msra.mxu0 0
        %784 = vmatprep.subr.bf16.mxu0 0
        %785 = vmatpush1.bf16.msra.mxu0 0
        %786 = vmatprep.subr.bf16.mxu0 0
        %787 = vmatpush1.bf16.msra.mxu0 0
        %788 = vmatprep.subr.bf16.mxu0 0
        %789 = vmatpush1.bf16.msra.mxu0 0
        %790 = vmatprep.subr.bf16.mxu0 0
        %791 = vmatpush1.bf16.msra.mxu0 0
        %792 = vmatprep.mubr.bf16.mxu0 0
        %793 = vmatmul.mubr.bf16.gmra.mrb[0].mxu0 %v754
        %v794 = vpop.f32.mrb[0].mxu0
        %v795 = vadd.f32 0.0, %v794
        %v796 = vpop.f32.mrb[0].mxu0
        %v797 = vpop.f32.mrb[0].mxu0
        %v798 = vpop.f32.mrb[0].mxu0
        %799 = vdwg.mxu0
        %v801 = vsel %vm504, %v746, 0
        %v804 = vsel %vm756, %v750, 0
        %806 = vmatprep.subr.bf16.mxu0 0
        %807 = vmatpush1.bf16.msra.mxu0 %v804
        %808 = vmatprep.subr.bf16.mxu0 0
        %809 = vmatpush1.bf16.msra.mxu0 0
        %810 = vmatprep.subr.bf16.mxu0 0
        %811 = vmatpush1.bf16.msra.mxu0 0
        %812 = vmatprep.subr.bf16.mxu0 0
        %813 = vmatpush1.bf16.msra.mxu0 0
        %814 = vmatprep.subr.bf16.mxu0 0
        %815 = vmatpush1.bf16.msra.mxu0 0
        %816 = vmatprep.subr.bf16.mxu0 0
        %817 = vmatpush1.bf16.msra.mxu0 0
        %818 = vmatprep.subr.bf16.mxu0 0
        %819 = vmatpush1.bf16.msra.mxu0 0
        %820 = vmatprep.subr.bf16.mxu0 0
        %821 = vmatpush1.bf16.msra.mxu0 0
        %822 = vmatprep.subr.bf16.mxu0 0
        %823 = vmatpush1.bf16.msra.mxu0 0
        %824 = vmatprep.subr.bf16.mxu0 0
        %825 = vmatpush1.bf16.msra.mxu0 0
        %826 = vmatprep.subr.bf16.mxu0 0
        %827 = vmatpush1.bf16.msra.mxu0 0
        %828 = vmatprep.subr.bf16.mxu0 0
        %829 = vmatpush1.bf16.msra.mxu0 0
        %830 = vmatprep.subr.bf16.mxu0 0
        %831 = vmatpush1.bf16.msra.mxu0 0
        %832 = vmatprep.subr.bf16.mxu0 0
        %833 = vmatpush1.bf16.msra.mxu0 0
        %834 = vmatprep.subr.bf16.mxu0 0
        %835 = vmatpush1.bf16.msra.mxu0 0
        %836 = vmatprep.subr.bf16.mxu0 0
        %837 = vmatpush1.bf16.msra.mxu0 0
        %838 = vmatprep.mubr.bf16.mxu0 0
        %839 = vmatmul.mubr.bf16.gmra.mrb[0].mxu0 %v801
        %v840 = vpop.f32.mrb[0].mxu0
        %v841 = vadd.f32 0.0, %v840
        %v842 = vpop.f32.mrb[0].mxu0
        %v843 = vpop.f32.mrb[0].mxu0
        %v844 = vpop.f32.mrb[0].mxu0
        %845 = vdwg.mxu0
        %v847 = vsel %vm504, %v747, 0
        %v850 = vsel %vm756, %v751, 0
        %852 = vmatprep.subr.bf16.mxu0 0
        %853 = vmatpush1.bf16.msra.mxu0 %v850
        %854 = vmatprep.subr.bf16.mxu0 0
        %855 = vmatpush1.bf16.msra.mxu0 0
        %856 = vmatprep.subr.bf16.mxu0 0
        %857 = vmatpush1.bf16.msra.mxu0 0
        %858 = vmatprep.subr.bf16.mxu0 0
        %859 = vmatpush1.bf16.msra.mxu0 0
        %860 = vmatprep.subr.bf16.mxu0 0
        %861 = vmatpush1.bf16.msra.mxu0 0
        %862 = vmatprep.subr.bf16.mxu0 0
        %863 = vmatpush1.bf16.msra.mxu0 0
        %864 = vmatprep.subr.bf16.mxu0 0
        %865 = vmatpush1.bf16.msra.mxu0 0
        %866 = vmatprep.subr.bf16.mxu0 0
        %867 = vmatpush1.bf16.msra.mxu0 0
        %868 = vmatprep.subr.bf16.mxu0 0
        %869 = vmatpush1.bf16.msra.mxu0 0
        %870 = vmatprep.subr.bf16.mxu0 0
        %871 = vmatpush1.bf16.msra.mxu0 0
        %872 = vmatprep.subr.bf16.mxu0 0
        %873 = vmatpush1.bf16.msra.mxu0 0
        %874 = vmatprep.subr.bf16.mxu0 0
        %875 = vmatpush1.bf16.msra.mxu0 0
        %876 = vmatprep.subr.bf16.mxu0 0
        %877 = vmatpush1.bf16.msra.mxu0 0
        %878 = vmatprep.subr.bf16.mxu0 0
        %879 = vmatpush1.bf16.msra.mxu0 0
        %880 = vmatprep.subr.bf16.mxu0 0
        %881 = vmatpush1.bf16.msra.mxu0 0
        %882 = vmatprep.subr.bf16.mxu0 0
        %883 = vmatpush1.bf16.msra.mxu0 0
        %884 = vmatprep.mubr.bf16.mxu0 0
        %885 = vmatmul.mubr.bf16.gmra.mrb[0].mxu0 %v847
        %v886 = vpop.f32.mrb[0].mxu0
        %v887 = vadd.f32 0.0, %v886
        %v888 = vpop.f32.mrb[0].mxu0
        %v889 = vpop.f32.mrb[0].mxu0
        %v890 = vpop.f32.mrb[0].mxu0
        %891 = vdwg.mxu0
        %v893 = vsel %vm504, %v748, 0
        %v896 = vsel %vm756, %v752, 0
        %898 = vmatprep.subr.bf16.mxu0 0
        %899 = vmatpush1.bf16.msra.mxu0 %v896
        %900 = vmatprep.subr.bf16.mxu0 0
        %901 = vmatpush1.bf16.msra.mxu0 0
        %902 = vmatprep.subr.bf16.mxu0 0
        %903 = vmatpush1.bf16.msra.mxu0 0
        %904 = vmatprep.subr.bf16.mxu0 0
        %905 = vmatpush1.bf16.msra.mxu0 0
        %906 = vmatprep.subr.bf16.mxu0 0
        %907 = vmatpush1.bf16.msra.mxu0 0
        %908 = vmatprep.subr.bf16.mxu0 0
        %909 = vmatpush1.bf16.msra.mxu0 0
        %910 = vmatprep.subr.bf16.mxu0 0
        %911 = vmatpush1.bf16.msra.mxu0 0
        %912 = vmatprep.subr.bf16.mxu0 0
        %913 = vmatpush1.bf16.msra.mxu0 0
        %914 = vmatprep.subr.bf16.mxu0 0
        %915 = vmatpush1.bf16.msra.mxu0 0
        %916 = vmatprep.subr.bf16.mxu0 0
        %917 = vmatpush1.bf16.msra.mxu0 0
        %918 = vmatprep.subr.bf16.mxu0 0
        %919 = vmatpush1.bf16.msra.mxu0 0
        %920 = vmatprep.subr.bf16.mxu0 0
        %921 = vmatpush1.bf16.msra.mxu0 0
        %922 = vmatprep.subr.bf16.mxu0 0
        %923 = vmatpush1.bf16.msra.mxu0 0
        %924 = vmatprep.subr.bf16.mxu0 0
        %925 = vmatpush1.bf16.msra.mxu0 0
        %926 = vmatprep.subr.bf16.mxu0 0
        %927 = vmatpush1.bf16.msra.mxu0 0
        %928 = vmatprep.subr.bf16.mxu0 0
        %929 = vmatpush1.bf16.msra.mxu0 0
        %930 = vmatprep.mubr.bf16.mxu0 0
        %931 = vmatmul.mubr.bf16.gmra.mrb[0].mxu0 %v893
        %v932 = vpop.f32.mrb[0].mxu0
        %v933 = vadd.f32 0.0, %v932
        %v934 = vpop.f32.mrb[0].mxu0
        %v935 = vpop.f32.mrb[0].mxu0
        %v936 = vpop.f32.mrb[0].mxu0
        %937 = vdwg.mxu0
        %v938 = vpack.c.bf16 %v795, %v795
        %939 = vst.msk [vmem:[#allocation5] sm:$0xf] %vm476, %v938
        %v940 = vpack.c.bf16 %v841, %v841
        %v942 = vunpack.c.l.b16 %v940
        %v943 = vpack.c.b16 %v942, %v942
        %944 = vrot.lane.b32.xlu0 %v943, 8
        %v945 = vpop.permute.xlu0 %944
        %vm947 = vcmask 126016
        %948 = vst.msk [vmem:[#allocation5] sm:$0xf] %vm947, %v945
        %v949 = vpack.c.bf16 %v887, %v887
        %v951 = vunpack.c.l.b16 %v949
        %v952 = vpack.c.b16 %v951, %v951
        %953 = vrot.lane.b32.xlu0 %v952, 16
        %v954 = vpop.permute.xlu0 %953
        %vm956 = vcmask 191616
        %957 = vst.msk [vmem:[#allocation5] sm:$0xf] %vm956, %v954
        %v958 = vpack.c.bf16 %v933, %v933
        %v960 = vunpack.c.l.b16 %v958
        %v961 = vpack.c.b16 %v960, %v960
        %962 = vrot.lane.b32.xlu0 %v961, 24
        %v963 = vpop.permute.xlu0 %962
        %vm965 = vcmask 257216
        %966 = vst.msk [vmem:[#allocation5] sm:$0xf] %vm965, %v963
        %v967 = vld [vmem:[#allocation5] sm:$0xf]
        %v968 = vld [vmem:[#allocation11] sm:$0xf]
        %v969 = vld [vmem:[#allocation11 + $0x4] sm:$0xf]
        %v970 = vld [vmem:[#allocation11 + $0x8] sm:$0xf]
        %v971 = vld [vmem:[#allocation11 + $0xc] sm:$0xf]
        %v972 = vld [vmem:[%s4] sm:$0x1]
        %v974 = vlaneseq
        %v975 = vshrl.u32 %v974, 7
        %v976 = vsub.s32 0, %v975
        %v977 = vrot.slane %v972, %v976
        %v983 = vunpack.c.l.b16 %v968
        %v984 = vunpack.c.l.b16 %v969
        %v985 = vunpack.c.l.b16 %v970
        %v986 = vunpack.c.l.b16 %v971
        %v987 = vpack.c.b16 %v984, %v983
        %v988 = vpack.c.b16 %v986, %v985
        %v992 = vsel %vm431, %v967, 0
        %994 = vmatprep.subr.bf16.mxu0 0
        %995 = vmatpush1.bf16.msra.mxu0 %v987
        %996 = vmatprep.subr.bf16.mxu0 0
        %997 = vmatpush1.bf16.msra.mxu0 %v988
        %998 = vmatprep.subr.bf16.mxu0 0
        %999 = vmatpush1.bf16.msra.mxu0 0
        %1000 = vmatprep.subr.bf16.mxu0 0
        %1001 = vmatpush1.bf16.msra.mxu0 0
        %1002 = vmatprep.subr.bf16.mxu0 0
        %1003 = vmatpush1.bf16.msra.mxu0 0
        %1004 = vmatprep.subr.bf16.mxu0 0
        %1005 = vmatpush1.bf16.msra.mxu0 0
        %1006 = vmatprep.subr.bf16.mxu0 0
        %1007 = vmatpush1.bf16.msra.mxu0 0
        %1008 = vmatprep.subr.bf16.mxu0 0
        %1009 = vmatpush1.bf16.msra.mxu0 0
        %1010 = vmatprep.subr.bf16.mxu0 0
        %1011 = vmatpush1.bf16.msra.mxu0 0
        %1012 = vmatprep.subr.bf16.mxu0 0
        %1013 = vmatpush1.bf16.msra.mxu0 0
        %1014 = vmatprep.subr.bf16.mxu0 0
        %1015 = vmatpush1.bf16.msra.mxu0 0
        %1016 = vmatprep.subr.bf16.mxu0 0
        %1017 = vmatpush1.bf16.msra.mxu0 0
        %1018 = vmatprep.subr.bf16.mxu0 0
        %1019 = vmatpush1.bf16.msra.mxu0 0
        %1020 = vmatprep.subr.bf16.mxu0 0
        %1021 = vmatpush1.bf16.msra.mxu0 0
        %1022 = vmatprep.subr.bf16.mxu0 0
        %1023 = vmatpush1.bf16.msra.mxu0 0
        %1024 = vmatprep.subr.bf16.mxu0 0
        %1025 = vmatpush1.bf16.msra.mxu0 0
        %1026 = vmatprep.mubr.bf16.mxu0 0
        %1027 = vmatmul.mubr.bf16.gmra.mrb[0].mxu0 %v992
        %v1028 = vpop.f32.mrb[0].mxu0
        %v1029 = vadd.f32 %v977, %v1028
        %v1030 = vpop.f32.mrb[0].mxu0
        %v1031 = vpop.f32.mrb[0].mxu0
        %v1032 = vpop.f32.mrb[0].mxu0
        %1033 = vdwg.mxu0
        %1034 = vst.msk [vmem:[%s282] sm:$0xff] %vm431, %v1029
        %s1035 = sand.u32 %s155, 1
        %s1036 = scalar_lea.sflag [#allocation8], %s1035
        %s1037 = sand.u32 %s155, 1
        %s1038 = smul.addr %s1037, 8
        %s1039 = scalar_lea.vmem [#allocation12], %s1038
        // Predicated region
        $region57: #{tpu_custom_call.1} parent=39 // pred_check
          %p1040 = pneg %p165
        $region58: #{tpu_custom_call.1} parent=39 // pred_check_branch
          %1042 = sbr.rel (%p1040) target = $region60
        $region59: #{tpu_custom_call.1} parent=39 // pred_region
          %s1044 = ssub.s32 128, 128
          %1045 = vsyncadd %s1036, %s1044
          %s1046 = sadd.s32 %s28, %s27
          %s1047 = smul.addr %s1046, 128
          %s1048 = scalar_lea.hbm %s5, %s1047
          %s1050 = sshll.u32 %s1039, 4
          %s1051 = int_to_ptr.vmem [resolvable:$true] %s1050
          %1053 = dma.vmem_to_hbm [thread:$0]  %s1051, 128, %s1048, %s1036
        $region60: #{tpu_custom_call.1} parent=39 // pred_fallthru
          _
      $region40: #{tpu_custom_call.1} parent=5 // pred_fallthru
        _
      %p1054 = scmp.le.s32.totalorder 2, %s18
      // Predicated region
      $region61: #{tpu_custom_call.1} parent=5 // pred_check
        %p1055 = pneg %p1054
      $region62: #{tpu_custom_call.1} parent=5 // pred_check_branch
        %1057 = sbr.rel (%p1055) target = $region64
      $region63: #{tpu_custom_call.1} parent=5 // pred_region
        %s1058 = ssub.s32 %s18, 2
        // Predicated region
        $region65: #{tpu_custom_call.1} parent=63 // pred_check
          %p1059 = pneg %p171
        $region66: #{tpu_custom_call.1} parent=63 // pred_check_branch
          %1061 = sbr.rel (%p1059) target = $region68
        $region67: #{tpu_custom_call.1} parent=63 // pred_region
          %s1062 = sand.u32 %s156, 1
          %s1063 = scalar_lea.sflag [#allocation8], %s1062
          %s1064 = sand.u32 %s156, 1
          %s1065 = smul.addr %s1064, 8
          %s1066 = scalar_lea.vmem [#allocation12], %s1065
          %1067 = dma.done %s1063, 128
        $region68: #{tpu_custom_call.1} parent=63 // pred_fallthru
          _
      $region64: #{tpu_custom_call.1} parent=5 // pred_fallthru
        _
    $region6: #{tpu_custom_call.1} parent=1 // loop_footer
      %s22 = sadd.s32 1, %s18
    $region7: #{tpu_custom_call.1} parent=1 // loop_footer_branch
      %17 = sbr.rel target = $region3
    $region8: #{tpu_custom_call.1} parent=1 // loop_exit
      _
    %1068 = vsyncpa [#allocation7], 1
    %s1069 = scalar_lea.sflag [#allocation7], 1
    %1070 = vsyncpa %s1069, 1
    %1071 = vsyncpa [#allocation10], 1
    %1072 = vsyncpa [#allocation8], 1
    %s1073 = scalar_lea.sflag [#allocation8], 1
    %1074 = vsyncpa %s1073, 1

// kernel: tpu_custom_call.1
$region0: #{tpu_custom_call.1}
  #allocation0 [shape = 'u32[]', space=smem, size = 0x4, offset = 0x4, fixed_abs, tag = 'smem constant byte address 0x4 - core index']
  #allocation1 [shape = 'u32[144,128]{1,0:T(1,128)}', space=vmem, size = 0x12000, scoped, tag = 'internal scratch']
  #allocation2 [shape = 'bf16[4,8,8]{2,1,0:T(8,128)(2,1)}', space=vmem, size = 0x2000, scoped, tag = 'scratch operand']
  #allocation3 [shape = 'bf16[4,8,8]{2,1,0:T(8,128)(2,1)}', space=vmem, size = 0x2000, scoped, tag = 'scratch operand']
  #allocation4 [shape = 'bf16[4,8,8]{2,1,0:T(8,128)(2,1)}', space=vmem, size = 0x2000, scoped, tag = 'scratch operand']
  #allocation5 [shape = 'bf16[8,32]{1,0:T(8,128)(2,1)}', space=vmem, size = 0x800, scoped, tag = 'scratch operand']
  %s0 = inlined_call_operand.hbm [shape: bf16[2,8,32], index: 0, kind: input, shape index: {}]
  %s1 = inlined_call_operand.hbm [shape: bf16[32,96], index: 1, kind: input, shape index: {}]
  %s2 = inlined_call_operand.vmem [shape: f32[1,96], index: 2, kind: input, shape index: {}]
  %s3 = inlined_call_operand.hbm [shape: bf16[32,32], index: 3, kind: input, shape index: {}]
  %s4 = inlined_call_operand.vmem [shape: f32[1,32], index: 4, kind: input, shape index: {}]
  %s5 = inlined_call_operand.hbm [shape: f32[2,8,32], index: 5, kind: output, shape index: {}]
  %s6 = sld [smem:[#allocation0]]
  $region69: #{tpu_custom_call.1} parent=0
    _
  %s8 = ssub.s32 1, %s6
  %s9 = scalar_select 0, %s8, %s6
  $region1: #{tpu_custom_call.1} parent=0
    #allocation6 [shape = 'u8[4096]{0}', space=vmem, size = 0x1000, scoped, tag = 'input window, operand 0']
    #allocation7 [shape = 's32[2]{0}', space=sflag, size = 0x8, scoped, tag = 'scoped memory for tpu_custom_call.1']
    #allocation8 [shape = 's32[2]{0}', space=sflag, size = 0x8, scoped, tag = 'scoped memory for tpu_custom_call.1']
    #allocation9 [shape = 'u8[8192]{0}', space=vmem, size = 0x2000, scoped, tag = 'input window, operand 1, single buffered']
    #allocation10 [shape = 's32[1]{0}', space=sflag, size = 0x4, scoped, tag = 'scoped memory for tpu_custom_call.1']
    #allocation11 [shape = 'u8[8192]{0}', space=vmem, size = 0x2000, scoped, tag = 'input window, operand 3, single buffered']
    #allocation12 [shape = 'u8[8192]{0}', space=vmem, size = 0x2000, scoped, tag = 'output window, operand 0']
    %10 = vsyncpa [#allocation7], 0
    %s11 = scalar_lea.sflag [#allocation7], 1
    %12 = vsyncpa %s11, 0
    %13 = vsyncpa [#allocation10], 0
    %14 = vsyncpa [#allocation8], 0
    %s15 = scalar_lea.sflag [#allocation8], 1
    %16 = vsyncpa %s15, 0
    loop: start=0, step=1, limit=4
    $region2: #{tpu_custom_call.1} parent=1 // loop_pre_header
      _
    $region3: #{tpu_custom_call.1} parent=1 // loop_header
      %s18 = sphi 0, %s22
      %p19 = scmp.ge.s32.totalorder %s18, 4
      %s25 = sphi 0, %s37
      %s26 = sphi 0, %s33
      %s27 = sphi 0, %s25
      %s28 = sphi 0, %s26
      %s29 = sphi 0, %s27
      %s30 = sphi 0, %s28
      %s40 = sphi 0, %s42
      %s43 = sphi 0, %s40
      %s44 = sphi 0, %s43
      %s60 = sphi 0, %s44
      %s64 = sphi 0, %s64
      %s66 = sphi 0, %s64
      %s67 = sphi 0, %s66
      %s81 = sphi 0, %s67
      %s85 = sphi 0, %s85
      %s87 = sphi 0, %s85
      %s88 = sphi 0, %s87
      %s102 = sphi 0, %s88
      %s106 = sphi 0, %s106
      %s108 = sphi 0, %s106
      %s109 = sphi 0, %s108
      %s123 = sphi 0, %s109
      %s127 = sphi 0, %s127
      %s129 = sphi 0, %s127
      %s130 = sphi 0, %s129
      %s144 = sphi 0, %s130
      %s152 = sphi 0, %s154
      %s155 = sphi 0, %s152
      %s156 = sphi 0, %s155
      %s172 = sphi 0, %s156
    $region4: #{tpu_custom_call.1} parent=1 // loop_header_branch
      %21 = sbr.rel (%p19) target = $region8
    $region5: #{tpu_custom_call.1} parent=1 // loop_body
      %s23 = ssub.s32 %s18, 1
      %s24 = ssub.s32 %s18, 2
      %s31 = sadd.s32 1, %s26
      %p32 = scmp.ge.s32.totalorder %s31, 1
      %s33 = scalar_select %p32, 0, %s31
      %s34 = sadd.s32 1, %s25
      %s35 = scalar_select %p32, %s34, %s25
      %p36 = scmp.ge.s32.totalorder %s35, 2
      %s37 = scalar_select %p36, 0, %s35
      %s38 = ssub.s32 %s25, %s37
      %p39 = scmp.eq.s32.totalorder %s38, 0
      %s41 = sadd.s32 %s40, 1
      %s42 = scalar_select %p39, %s40, %s41
      %p45 = pneg %p39
      %p46 = scmp.eq.s32.totalorder %s18, 1
      %p47 = por %p45, %p46
      %p48 = scmp.ne.s32.totalorder %s40, %s43
      %p49 = scmp.eq.s32.totalorder %s18, 0
      %p50 = por %p48, %p49
      %p51 = scmp.ne.s32.totalorder %s40, %s43
      %p52 = scmp.eq.s32.totalorder %s23, 1
      %p53 = por %p51, %p52
      %p54 = scmp.ne.s32.totalorder %s43, %s44
      %p55 = scmp.eq.s32.totalorder %s23, 0
      %p56 = por %p54, %p55
      %p57 = scmp.ne.s32.totalorder %s43, %s44
      %p58 = scmp.eq.s32.totalorder %s24, 1
      %p59 = por %p57, %p58
      %p61 = scmp.ne.s32.totalorder %s44, %s60
      %p62 = scmp.eq.s32.totalorder %s24, 0
      %p63 = por %p61, %p62
      %s65 = sadd.s32 %s64, 1
      %p68 = scmp.eq.s32.totalorder %s18, 1
      %p69 = scmp.ne.s32.totalorder %s64, %s66
      %p70 = scmp.eq.s32.totalorder %s18, 0
      %p71 = por %p69, %p70
      %p72 = scmp.ne.s32.totalorder %s64, %s66
      %p73 = scmp.eq.s32.totalorder %s23, 1
      %p74 = por %p72, %p73
      %p75 = scmp.ne.s32.totalorder %s66, %s67
      %p76 = scmp.eq.s32.totalorder %s23, 0
      %p77 = por %p75, %p76
      %p78 = scmp.ne.s32.totalorder %s66, %s67
      %p79 = scmp.eq.s32.totalorder %s24, 1
      %p80 = por %p78, %p79
      %p82 = scmp.ne.s32.totalorder %s67, %s81
      %p83 = scmp.eq.s32.totalorder %s24, 0
      %p84 = por %p82, %p83
      %s86 = sadd.s32 %s85, 1
      %p89 = scmp.eq.s32.totalorder %s18, 1
      %p90 = scmp.ne.s32.totalorder %s85, %s87
      %p91 = scmp.eq.s32.totalorder %s18, 0
      %p92 = por %p90, %p91
      %p93 = scmp.ne.s32.totalorder %s85, %s87
      %p94 = scmp.eq.s32.totalorder %s23, 1
      %p95 = por %p93, %p94
      %p96 = scmp.ne.s32.totalorder %s87, %s88
      %p97 = scmp.eq.s32.totalorder %s23, 0
      %p98 = por %p96, %p97
      %p99 = scmp.ne.s32.totalorder %s87, %s88
      %p100 = scmp.eq.s32.totalorder %s24, 1
      %p101 = por %p99, %p100
      %p103 = scmp.ne.s32.totalorder %s88, %s102
      %p104 = scmp.eq.s32.totalorder %s24, 0
      %p105 = por %p103, %p104
      %s107 = sadd.s32 %s106, 1
      %p110 = scmp.eq.s32.totalorder %s18, 1
      %p111 = scmp.ne.s32.totalorder %s106, %s108
      %p112 = scmp.eq.s32.totalorder %s18, 0
      %p113 = por %p111, %p112
      %p114 = scmp.ne.s32.totalorder %s106, %s108
      %p115 = scmp.eq.s32.totalorder %s23, 1
      %p116 = por %p114, %p115
      %p117 = scmp.ne.s32.totalorder %s108, %s109
      %p118 = scmp.eq.s32.totalorder %s23, 0
      %p119 = por %p117, %p118
      %p120 = scmp.ne.s32.totalorder %s108, %s109
      %p121 = scmp.eq.s32.totalorder %s24, 1
      %p122 = por %p120, %p121
      %p124 = scmp.ne.s32.totalorder %s109, %s123
      %p125 = scmp.eq.s32.totalorder %s24, 0
      %p126 = por %p124, %p125
      %s128 = sadd.s32 %s127, 1
      %p131 = scmp.eq.s32.totalorder %s18, 1
      %p132 = scmp.ne.s32.totalorder %s127, %s129
      %p133 = scmp.eq.s32.totalorder %s18, 0
      %p134 = por %p132, %p133
      %p135 = scmp.ne.s32.totalorder %s127, %s129
      %p136 = scmp.eq.s32.totalorder %s23, 1
      %p137 = por %p135, %p136
      %p138 = scmp.ne.s32.totalorder %s129, %s130
      %p139 = scmp.eq.s32.totalorder %s23, 0
      %p140 = por %p138, %p139
      %p141 = scmp.ne.s32.totalorder %s129, %s130
      %p142 = scmp.eq.s32.totalorder %s24, 1
      %p143 = por %p141, %p142
      %p145 = scmp.ne.s32.totalorder %s130, %s144
      %p146 = scmp.eq.s32.totalorder %s24, 0
      %p147 = por %p145, %p146
      %s148 = ssub.s32 %s25, %s37
      %s149 = ssub.s32 %s26, %s33
      %s150 = sor.u32 %s148, %s149
      %p151 = scmp.eq.s32.totalorder %s150, 0
      %s153 = sadd.s32 %s152, 1
      %s154 = scalar_select %p151, %s152, %s153
      %p157 = pneg %p151
      %p158 = scmp.eq.s32.totalorder %s18, 1
      %p159 = por %p157, %p158
      %p160 = scmp.ne.s32.totalorder %s152, %s155
      %p161 = scmp.eq.s32.totalorder %s18, 0
      %p162 = por %p160, %p161
      %p163 = scmp.ne.s32.totalorder %s152, %s155
      %p164 = scmp.eq.s32.totalorder %s23, 1
      %p165 = por %p163, %p164
      %p166 = scmp.ne.s32.totalorder %s155, %s156
      %p167 = scmp.eq.s32.totalorder %s23, 0
      %p168 = por %p166, %p167
      %p169 = scmp.ne.s32.totalorder %s155, %s156
      %p170 = scmp.eq.s32.totalorder %s24, 1
      %p171 = por %p169, %p170
      %p173 = scmp.ne.s32.totalorder %s156, %s172
      %p174 = scmp.eq.s32.totalorder %s24, 0
      %p175 = por %p173, %p174
      %p176 = scmp.le.s32.totalorder 1, %s18
      %p177 = scmp.lt.s32.totalorder %s18, 3
      %p178 = pnand %p176, %p177
      %p179 = pneg %p178
      // Predicated region
      $region9: #{tpu_custom_call.1} parent=5 // pred_check
        _
      $region10: #{tpu_custom_call.1} parent=5 // pred_check_branch
        %181 = sbr.rel (%p178) target = $region12
      $region11: #{tpu_custom_call.1} parent=5 // pred_region
        %s182 = ssub.s32 %s18, 1
        // Predicated region
        $region13: #{tpu_custom_call.1} parent=11 // pred_check
          %p183 = pneg %p77
        $region14: #{tpu_custom_call.1} parent=11 // pred_check_branch
          %185 = sbr.rel (%p183) target = $region16
        $region15: #{tpu_custom_call.1} parent=11 // pred_region
          %s187 = ssub.s32 256, 256
          %188 = vsyncadd [#allocation10], %s187
          %s189 = sshll.u32 [#allocation9], 4
          %s190 = int_to_ptr.vmem [resolvable:$true] %s189
          %195 = dma.hbm_to_vmem [thread:$0]  %s1, 256, %s190, [#allocation10], 64, 64, 4
        $region16: #{tpu_custom_call.1} parent=11 // pred_fallthru
          _
        // Predicated region
        $region17: #{tpu_custom_call.1} parent=11 // pred_check
          %p196 = pneg %p98
        $region18: #{tpu_custom_call.1} parent=11 // pred_check_branch
          %198 = sbr.rel (%p196) target = $region20
        $region19: #{tpu_custom_call.1} parent=11 // pred_region
          _
        $region20: #{tpu_custom_call.1} parent=11 // pred_fallthru
          _
        // Predicated region
        $region21: #{tpu_custom_call.1} parent=11 // pred_check
          %p199 = pneg %p119
        $region22: #{tpu_custom_call.1} parent=11 // pred_check_branch
          %201 = sbr.rel (%p199) target = $region24
        $region23: #{tpu_custom_call.1} parent=11 // pred_region
          %s203 = ssub.s32 256, 256
          %204 = vsyncadd [#allocation10], %s203
          %s205 = sshll.u32 [#allocation11], 4
          %s206 = int_to_ptr.vmem [resolvable:$true] %s205
          %211 = dma.hbm_to_vmem [thread:$0]  %s3, 256, %s206, [#allocation10], 64, 64, 4
        $region24: #{tpu_custom_call.1} parent=11 // pred_fallthru
          _
        // Predicated region
        $region25: #{tpu_custom_call.1} parent=11 // pred_check
          %p212 = pneg %p140
        $region26: #{tpu_custom_call.1} parent=11 // pred_check_branch
          %214 = sbr.rel (%p212) target = $region28
        $region27: #{tpu_custom_call.1} parent=11 // pred_region
          _
        $region28: #{tpu_custom_call.1} parent=11 // pred_fallthru
          _
      $region12: #{tpu_custom_call.1} parent=5 // pred_fallthru
        _
      %p215 = scmp.lt.s32.totalorder %s18, 2
      // Predicated region
      $region29: #{tpu_custom_call.1} parent=5 // pred_check
        %p216 = pneg %p215
      $region30: #{tpu_custom_call.1} parent=5 // pred_check_branch
        %218 = sbr.rel (%p216) target = $region32
      $region31: #{tpu_custom_call.1} parent=5 // pred_region
        // Predicated region
        $region33: #{tpu_custom_call.1} parent=31 // pred_check
          %p219 = pneg %p50
        $region34: #{tpu_custom_call.1} parent=31 // pred_check_branch
          %221 = sbr.rel (%p219) target = $region36
        $region35: #{tpu_custom_call.1} parent=31 // pred_region
          %s222 = sand.u32 %s40, 1
          %s223 = scalar_lea.sflag [#allocation7], %s222
          %s224 = sand.u32 %s40, 1
          %s225 = smul.addr %s224, 4
          %s226 = scalar_lea.vmem [#allocation6], %s225
          %s228 = ssub.s32 64, 64
          %229 = vsyncadd %s223, %s228
          %s230 = smul.addr %s25, 64
          %s231 = scalar_lea.hbm %s0, %s230
          %s233 = sshll.u32 %s226, 4
          %s234 = int_to_ptr.vmem [resolvable:$true] %s233
          %236 = dma.hbm_to_vmem [thread:$0]  %s231, 64, %s234, %s223
        $region36: #{tpu_custom_call.1} parent=31 // pred_fallthru
          _
      $region32: #{tpu_custom_call.1} parent=5 // pred_fallthru
        _
      %p237 = scmp.le.s32.totalorder 1, %s18
      %p238 = scmp.lt.s32.totalorder %s18, 3
      %p239 = pnand %p237, %p238
      %p240 = pneg %p239
      // Predicated region
      $region37: #{tpu_custom_call.1} parent=5 // pred_check
        _
      $region38: #{tpu_custom_call.1} parent=5 // pred_check_branch
        %242 = sbr.rel (%p239) target = $region40
      $region39: #{tpu_custom_call.1} parent=5 // pred_region
        %s243 = ssub.s32 %s18, 1
        %s244 = sand.u32 %s43, 1
        %s245 = scalar_lea.sflag [#allocation7], %s244
        %s246 = sand.u32 %s43, 1
        %s247 = smul.addr %s246, 4
        %s248 = scalar_lea.vmem [#allocation6], %s247
        // Predicated region
        $region41: #{tpu_custom_call.1} parent=39 // pred_check
          %p249 = pneg %p56
        $region42: #{tpu_custom_call.1} parent=39 // pred_check_branch
          %251 = sbr.rel (%p249) target = $region44
        $region43: #{tpu_custom_call.1} parent=39 // pred_region
          %252 = dma.done %s245, 64
        $region44: #{tpu_custom_call.1} parent=39 // pred_fallthru
          _
        // Predicated region
        $region45: #{tpu_custom_call.1} parent=39 // pred_check
          %p253 = pneg %p77
        $region46: #{tpu_custom_call.1} parent=39 // pred_check_branch
          %255 = sbr.rel (%p253) target = $region48
        $region47: #{tpu_custom_call.1} parent=39 // pred_region
          %256 = dma.done [#allocation10], 256
        $region48: #{tpu_custom_call.1} parent=39 // pred_fallthru
          _
        // Predicated region
        $region49: #{tpu_custom_call.1} parent=39 // pred_check
          %p257 = pneg %p119
        $region50: #{tpu_custom_call.1} parent=39 // pred_check_branch
          %259 = sbr.rel (%p257) target = $region52
        $region51: #{tpu_custom_call.1} parent=39 // pred_region
          %260 = dma.done [#allocation10], 256
        $region52: #{tpu_custom_call.1} parent=39 // pred_fallthru
          _
        %s261 = sand.u32 %s43, 1
        %s262 = scalar_lea.sflag [#allocation7], %s261
        %s263 = sand.u32 %s43, 1
        %s264 = smul.addr %s263, 4
        %s265 = scalar_lea.vmem [#allocation6], %s264
        %p266 = pneg %p56
        %p267 = pneg %p53
        %p268 = pneg %p77
        %p269 = pneg %p74
        %p270 = pneg %p98
        %p271 = pneg %p95
        %p272 = pneg %p119
        %p273 = pneg %p116
        %p274 = pneg %p140
        %p275 = pneg %p137
        %p276 = pneg %p168
        %p277 = pneg %p165
        %s278 = sand.u32 %s155, 1
        %s279 = scalar_lea.sflag [#allocation8], %s278
        %s280 = sand.u32 %s155, 1
        %s281 = smul.addr %s280, 8
        %s282 = scalar_lea.vmem [#allocation12], %s281
        %p284 = scmp.eq.s32.totalorder %s28, 0
        // Predicated region
        $region53: #{tpu_custom_call.1} parent=39 // pred_check
          %p285 = pneg %p284
        $region54: #{tpu_custom_call.1} parent=39 // pred_check_branch
          %287 = sbr.rel (%p285) target = $region56
        $region55: #{tpu_custom_call.1} parent=39 // pred_region
          %v288 = vld [vmem:[%s248] sm:$0xf]
          %v289 = vld [vmem:[#allocation9] sm:$0xf]
          %v290 = vld [vmem:[#allocation9 + $0x4] sm:$0xf]
          %v291 = vld [vmem:[#allocation9 + $0x8] sm:$0xf]
          %v292 = vld [vmem:[#allocation9 + $0xc] sm:$0xf]
          %v293 = vld [vmem:[%s2] sm:$0x1]
          %v295 = vlaneseq
          %v296 = vshrl.u32 %v295, 7
          %v297 = vsub.s32 0, %v296
          %v298 = vrot.slane %v293, %v297
          %v303 = vunpack.c.l.b16 %v289
          %v304 = vunpack.c.l.b16 %v290
          %v305 = vunpack.c.l.b16 %v291
          %v306 = vunpack.c.l.b16 %v292
          %v307 = vpack.c.b16 %v304, %v303
          %v308 = vpack.c.b16 %v306, %v305
          %309 = vrot.lane.b32.xlu0 %v307, 96
          %v310 = vpop.permute.xlu0 %309
          %311 = vrot.lane.b32.xlu0 %v308, 96
          %v312 = vpop.permute.xlu0 %311
          %315 = vrot.lane.b32.xlu0 %v298, 96
          %v316 = vpop.permute.xlu0 %315
          %vm318 = vcmask 261120
          %v320 = vsel %vm318, %v288, 0
          %322 = vmatprep.subr.bf16.mxu0 0
          %323 = vmatpush1.bf16.msra.mxu0 %v310
          %324 = vmatprep.subr.bf16.mxu0 0
          %325 = vmatpush1.bf16.msra.mxu0 %v312
          %326 = vmatprep.subr.bf16.mxu0 0
          %327 = vmatpush1.bf16.msra.mxu0 0
          %328 = vmatprep.subr.bf16.mxu0 0
          %329 = vmatpush1.bf16.msra.mxu0 0
          %330 = vmatprep.subr.bf16.mxu0 0
          %331 = vmatpush1.bf16.msra.mxu0 0
          %332 = vmatprep.subr.bf16.mxu0 0
          %333 = vmatpush1.bf16.msra.mxu0 0
          %334 = vmatprep.subr.bf16.mxu0 0
          %335 = vmatpush1.bf16.msra.mxu0 0
          %336 = vmatprep.subr.bf16.mxu0 0
          %337 = vmatpush1.bf16.msra.mxu0 0
          %338 = vmatprep.subr.bf16.mxu0 0
          %339 = vmatpush1.bf16.msra.mxu0 0
          %340 = vmatprep.subr.bf16.mxu0 0
          %341 = vmatpush1.bf16.msra.mxu0 0
          %342 = vmatprep.subr.bf16.mxu0 0
          %343 = vmatpush1.bf16.msra.mxu0 0
          %344 = vmatprep.subr.bf16.mxu0 0
          %345 = vmatpush1.bf16.msra.mxu0 0
          %346 = vmatprep.subr.bf16.mxu0 0
          %347 = vmatpush1.bf16.msra.mxu0 0
          %348 = vmatprep.subr.bf16.mxu0 0
          %349 = vmatpush1.bf16.msra.mxu0 0
          %350 = vmatprep.subr.bf16.mxu0 0
          %351 = vmatpush1.bf16.msra.mxu0 0
          %352 = vmatprep.subr.bf16.mxu0 0
          %353 = vmatpush1.bf16.msra.mxu0 0
          %354 = vmatprep.mubr.bf16.mxu0 0
          %355 = vmatmul.mubr.bf16.gmra.mrb[0].mxu0 %v320
          %v356 = vpop.f32.mrb[0].mxu0
          %v357 = vadd.f32 %v316, %v356
          %v358 = vpop.f32.mrb[0].mxu0
          %v359 = vpop.f32.mrb[0].mxu0
          %v360 = vpop.f32.mrb[0].mxu0
          %361 = vdwg.mxu0
          %v362 = vpack.c.bf16 %v357, %v357
          %vm363 = vcmask 60416
          %364 = vst.msk [vmem:[#allocation3] sm:$0xf] %vm363, %v362
          %v366 = vunpack.c.l.b16 %v362
          %v367 = vpack.c.b16 %v366, %v366
          %368 = vrot.lane.b32.xlu0 %v367, 96
          %v369 = vpop.permute.xlu0 %368
          %371 = vst.msk [vmem:[#allocation4] sm:$0xf] %vm363, %v369
          %372 = vrot.lane.b32.xlu0 %v367, 120
          %v373 = vpop.permute.xlu0 %372
          %s375 = scalar_lea.vmem [#allocation3], 4
          %376 = vst.msk [vmem:[%s375] sm:$0xf] %vm363, %v373
          %377 = vrot.lane.b32.xlu0 %v367, 88
          %v378 = vpop.permute.xlu0 %377
          %s380 = scalar_lea.vmem [#allocation4], 4
          %381 = vst.msk [vmem:[%s380] sm:$0xf] %vm363, %v378
          %382 = vrot.lane.b32.xlu0 %v367, 112
          %v383 = vpop.permute.xlu0 %382
          %s385 = scalar_lea.vmem [#allocation3], 8
          %386 = vst.msk [vmem:[%s385] sm:$0xf] %vm363, %v383
          %387 = vrot.lane.b32.xlu0 %v367, 80
          %v388 = vpop.permute.xlu0 %387
          %s390 = scalar_lea.vmem [#allocation4], 8
          %391 = vst.msk [vmem:[%s390] sm:$0xf] %vm363, %v388
          %392 = vrot.lane.b32.xlu0 %v367, 104
          %v393 = vpop.permute.xlu0 %392
          %s395 = scalar_lea.vmem [#allocation3], 12
          %396 = vst.msk [vmem:[%s395] sm:$0xf] %vm363, %v393
          %397 = vrot.lane.b32.xlu0 %v367, 72
          %v398 = vpop.permute.xlu0 %397
          %s400 = scalar_lea.vmem [#allocation4], 12
          %401 = vst.msk [vmem:[%s400] sm:$0xf] %vm363, %v398
        $region56: #{tpu_custom_call.1} parent=39 // pred_fallthru
          _
        %s402 = smul.u32 %s28, 8
        %s403 = sshra.s32 %s402, 3
        %s404 = sand.u32 %s402, 7
        %s405 = smul.addr %s403, 4
        %s406 = scalar_lea.vmem %s248, %s405 [#allocation6]
        %v407 = vld [vmem:[%s406] sm:$0xf]
        %v408 = vld [vmem:[#allocation9] sm:$0xf]
        %v409 = vld [vmem:[#allocation9 + $0x4] sm:$0xf]
        %v410 = vld [vmem:[#allocation9 + $0x8] sm:$0xf]
        %v411 = vld [vmem:[#allocation9 + $0xc] sm:$0xf]
        %v412 = vld [vmem:[%s2] sm:$0x1]
        %v414 = vlaneseq
        %v415 = vshrl.u32 %v414, 7
        %v416 = vsub.s32 0, %v415
        %v417 = vrot.slane %v412, %v416
        %v423 = vunpack.c.l.b16 %v408
        %v424 = vunpack.c.l.b16 %v409
        %v425 = vunpack.c.l.b16 %v410
        %v426 = vunpack.c.l.b16 %v411
        %v427 = vpack.c.b16 %v424, %v423
        %v428 = vpack.c.b16 %v426, %v425
        %vm431 = vcmask 261120
        %v433 = vsel %vm431, %v407, 0
        %435 = vmatprep.subr.bf16.mxu0 0
        %436 = vmatpush1.bf16.msra.mxu0 %v427
        %437 = vmatprep.subr.bf16.mxu0 0
        %438 = vmatpush1.bf16.msra.mxu0 %v428
        %439 = vmatprep.subr.bf16.mxu0 0
        %440 = vmatpush1.bf16.msra.mxu0 0
        %441 = vmatprep.subr.bf16.mxu0 0
        %442 = vmatpush1.bf16.msra.mxu0 0
        %443 = vmatprep.subr.bf16.mxu0 0
        %444 = vmatpush1.bf16.msra.mxu0 0
        %445 = vmatprep.subr.bf16.mxu0 0
        %446 = vmatpush1.bf16.msra.mxu0 0
        %447 = vmatprep.subr.bf16.mxu0 0
        %448 = vmatpush1.bf16.msra.mxu0 0
        %449 = vmatprep.subr.bf16.mxu0 0
        %450 = vmatpush1.bf16.msra.mxu0 0
        %451 = vmatprep.subr.bf16.mxu0 0
        %452 = vmatpush1.bf16.msra.mxu0 0
        %453 = vmatprep.subr.bf16.mxu0 0
        %454 = vmatpush1.bf16.msra.mxu0 0
        %455 = vmatprep.subr.bf16.mxu0 0
        %456 = vmatpush1.bf16.msra.mxu0 0
        %457 = vmatprep.subr.bf16.mxu0 0
        %458 = vmatpush1.bf16.msra.mxu0 0
        %459 = vmatprep.subr.bf16.mxu0 0
        %460 = vmatpush1.bf16.msra.mxu0 0
        %461 = vmatprep.subr.bf16.mxu0 0
        %462 = vmatpush1.bf16.msra.mxu0 0
        %463 = vmatprep.subr.bf16.mxu0 0
        %464 = vmatpush1.bf16.msra.mxu0 0
        %465 = vmatprep.subr.bf16.mxu0 0
        %466 = vmatpush1.bf16.msra.mxu0 0
        %467 = vmatprep.mubr.bf16.mxu0 0
        %468 = vmatmul.mubr.bf16.gmra.mrb[0].mxu0 %v433
        %v469 = vpop.f32.mrb[0].mxu0
        %v470 = vadd.f32 %v417, %v469
        %v471 = vpop.f32.mrb[0].mxu0
        %v472 = vpop.f32.mrb[0].mxu0
        %v473 = vpop.f32.mrb[0].mxu0
        %474 = vdwg.mxu0
        %v475 = vpack.c.bf16 %v470, %v470
        %vm476 = vcmask 60416
        %477 = vst.msk [vmem:[#allocation2] sm:$0xf] %vm476, %v475
        %v479 = vunpack.c.l.b16 %v475
        %v480 = vpack.c.b16 %v479, %v479
        %481 = vrot.lane.b32.xlu0 %v480, 120
        %v482 = vpop.permute.xlu0 %481
        %s484 = scalar_lea.vmem [#allocation2], 4
        %485 = vst.msk [vmem:[%s484] sm:$0xf] %vm476, %v482
        %486 = vrot.lane.b32.xlu0 %v480, 112
        %v487 = vpop.permute.xlu0 %486
        %s489 = scalar_lea.vmem [#allocation2], 8
        %490 = vst.msk [vmem:[%s489] sm:$0xf] %vm476, %v487
        %491 = vrot.lane.b32.xlu0 %v480, 104
        %v492 = vpop.permute.xlu0 %491
        %s494 = scalar_lea.vmem [#allocation2], 12
        %495 = vst.msk [vmem:[%s494] sm:$0xf] %vm476, %v492
        %v496 = vld [vmem:[#allocation2] sm:$0xf]
        %v497 = vld [vmem:[#allocation2 + $0x4] sm:$0xf]
        %v498 = vld [vmem:[#allocation2 + $0x8] sm:$0xf]
        %v499 = vld [vmem:[#allocation2 + $0xc] sm:$0xf]
        %v500 = vld [vmem:[#allocation3] sm:$0xf]
        %v501 = vld [vmem:[#allocation3 + $0x4] sm:$0xf]
        %v502 = vld [vmem:[#allocation3 + $0x8] sm:$0xf]
        %v503 = vld [vmem:[#allocation3 + $0xc] sm:$0xf]
        %vm504 = vcmask 64512
        %v506 = vsel %vm504, %v496, 0
        %v509 = vsel %vm504, %v500, 0
        %511 = vmatprep.subr.bf16.mxu0 0
        %512 = vmatpush1.bf16.xpose.msra.mxu0 %v509
        %513 = vmatprep.subr.bf16.mxu0 0
        %514 = vmatpush1.bf16.xpose.msra.mxu0 0
        %515 = vmatprep.subr.bf16.mxu0 0
        %516 = vmatpush1.bf16.xpose.msra.mxu0 0
        %517 = vmatprep.subr.bf16.mxu0 0
        %518 = vmatpush1.bf16.xpose.msra.mxu0 0
        %519 = vmatprep.subr.bf16.mxu0 0
        %520 = vmatpush1.bf16.xpose.msra.mxu0 0
        %521 = vmatprep.subr.bf16.mxu0 0
        %522 = vmatpush1.bf16.xpose.msra.mxu0 0
        %523 = vmatprep.subr.bf16.mxu0 0
        %524 = vmatpush1.bf16.xpose.msra.mxu0 0
        %525 = vmatprep.subr.bf16.mxu0 0
        %526 = vmatpush1.bf16.xpose.msra.mxu0 0
        %527 = vmatprep.subr.bf16.mxu0 0
        %528 = vmatpush1.bf16.xpose.msra.mxu0 0
        %529 = vmatprep.subr.bf16.mxu0 0
        %530 = vmatpush1.bf16.xpose.msra.mxu0 0
        %531 = vmatprep.subr.bf16.mxu0 0
        %532 = vmatpush1.bf16.xpose.msra.mxu0 0
        %533 = vmatprep.subr.bf16.mxu0 0
        %534 = vmatpush1.bf16.xpose.msra.mxu0 0
        %535 = vmatprep.subr.bf16.mxu0 0
        %536 = vmatpush1.bf16.xpose.msra.mxu0 0
        %537 = vmatprep.subr.bf16.mxu0 0
        %538 = vmatpush1.bf16.xpose.msra.mxu0 0
        %539 = vmatprep.subr.bf16.mxu0 0
        %540 = vmatpush1.bf16.xpose.msra.mxu0 0
        %541 = vmatprep.subr.bf16.mxu0 0
        %542 = vmatpush1.bf16.xpose.msra.mxu0 0
        %543 = vmatprep.mubr.bf16.mxu0 0
        %544 = vmatmul.mubr.bf16.gmra.mrb[0].mxu0 %v506
        %v545 = vpop.f32.mrb[0].mxu0
        %v546 = vadd.f32 0.0, %v545
        %v547 = vpop.f32.mrb[0].mxu0
        %v548 = vpop.f32.mrb[0].mxu0
        %v549 = vpop.f32.mrb[0].mxu0
        %550 = vdwg.mxu0
        %v552 = vsel %vm504, %v497, 0
        %v555 = vsel %vm504, %v501, 0
        %557 = vmatprep.subr.bf16.mxu0 0
        %558 = vmatpush1.bf16.xpose.msra.mxu0 %v555
        %559 = vmatprep.subr.bf16.mxu0 0
        %560 = vmatpush1.bf16.xpose.msra.mxu0 0
        %561 = vmatprep.subr.bf16.mxu0 0
        %562 = vmatpush1.bf16.xpose.msra.mxu0 0
        %563 = vmatprep.subr.bf16.mxu0 0
        %564 = vmatpush1.bf16.xpose.msra.mxu0 0
        %565 = vmatprep.subr.bf16.mxu0 0
        %566 = vmatpush1.bf16.xpose.msra.mxu0 0
        %567 = vmatprep.subr.bf16.mxu0 0
        %568 = vmatpush1.bf16.xpose.msra.mxu0 0
        %569 = vmatprep.subr.bf16.mxu0 0
        %570 = vmatpush1.bf16.xpose.msra.mxu0 0
        %571 = vmatprep.subr.bf16.mxu0 0
        %572 = vmatpush1.bf16.xpose.msra.mxu0 0
        %573 = vmatprep.subr.bf16.mxu0 0
        %574 = vmatpush1.bf16.xpose.msra.mxu0 0
        %575 = vmatprep.subr.bf16.mxu0 0
        %576 = vmatpush1.bf16.xpose.msra.mxu0 0
        %577 = vmatprep.subr.bf16.mxu0 0
        %578 = vmatpush1.bf16.xpose.msra.mxu0 0
        %579 = vmatprep.subr.bf16.mxu0 0
        %580 = vmatpush1.bf16.xpose.msra.mxu0 0
        %581 = vmatprep.subr.bf16.mxu0 0
        %582 = vmatpush1.bf16.xpose.msra.mxu0 0
        %583 = vmatprep.subr.bf16.mxu0 0
        %584 = vmatpush1.bf16.xpose.msra.mxu0 0
        %585 = vmatprep.subr.bf16.mxu0 0
        %586 = vmatpush1.bf16.xpose.msra.mxu0 0
        %587 = vmatprep.subr.bf16.mxu0 0
        %588 = vmatpush1.bf16.xpose.msra.mxu0 0
        %589 = vmatprep.mubr.bf16.mxu0 0
        %590 = vmatmul.mubr.bf16.gmra.mrb[0].mxu0 %v552
        %v591 = vpop.f32.mrb[0].mxu0
        %v592 = vadd.f32 0.0, %v591
        %v593 = vpop.f32.mrb[0].mxu0
        %v594 = vpop.f32.mrb[0].mxu0
        %v595 = vpop.f32.mrb[0].mxu0
        %596 = vdwg.mxu0
        %v598 = vsel %vm504, %v498, 0
        %v601 = vsel %vm504, %v502, 0
        %603 = vmatprep.subr.bf16.mxu0 0
        %604 = vmatpush1.bf16.xpose.msra.mxu0 %v601
        %605 = vmatprep.subr.bf16.mxu0 0
        %606 = vmatpush1.bf16.xpose.msra.mxu0 0
        %607 = vmatprep.subr.bf16.mxu0 0
        %608 = vmatpush1.bf16.xpose.msra.mxu0 0
        %609 = vmatprep.subr.bf16.mxu0 0
        %610 = vmatpush1.bf16.xpose.msra.mxu0 0
        %611 = vmatprep.subr.bf16.mxu0 0
        %612 = vmatpush1.bf16.xpose.msra.mxu0 0
        %613 = vmatprep.subr.bf16.mxu0 0
        %614 = vmatpush1.bf16.xpose.msra.mxu0 0
        %615 = vmatprep.subr.bf16.mxu0 0
        %616 = vmatpush1.bf16.xpose.msra.mxu0 0
        %617 = vmatprep.subr.bf16.mxu0 0
        %618 = vmatpush1.bf16.xpose.msra.mxu0 0
        %619 = vmatprep.subr.bf16.mxu0 0
        %620 = vmatpush1.bf16.xpose.msra.mxu0 0
        %621 = vmatprep.subr.bf16.mxu0 0
        %622 = vmatpush1.bf16.xpose.msra.mxu0 0
        %623 = vmatprep.subr.bf16.mxu0 0
        %624 = vmatpush1.bf16.xpose.msra.mxu0 0
        %625 = vmatprep.subr.bf16.mxu0 0
        %626 = vmatpush1.bf16.xpose.msra.mxu0 0
        %627 = vmatprep.subr.bf16.mxu0 0
        %628 = vmatpush1.bf16.xpose.msra.mxu0 0
        %629 = vmatprep.subr.bf16.mxu0 0
        %630 = vmatpush1.bf16.xpose.msra.mxu0 0
        %631 = vmatprep.subr.bf16.mxu0 0
        %632 = vmatpush1.bf16.xpose.msra.mxu0 0
        %633 = vmatprep.subr.bf16.mxu0 0
        %634 = vmatpush1.bf16.xpose.msra.mxu0 0
        %635 = vmatprep.mubr.bf16.mxu0 0
        %636 = vmatmul.mubr.bf16.gmra.mrb[0].mxu0 %v598
        %v637 = vpop.f32.mrb[0].mxu0
        %v638 = vadd.f32 0.0, %v637
        %v639 = vpop.f32.mrb[0].mxu0
        %v640 = vpop.f32.mrb[0].mxu0
        %v641 = vpop.f32.mrb[0].mxu0
        %642 = vdwg.mxu0
        %v644 = vsel %vm504, %v499, 0
        %v647 = vsel %vm504, %v503, 0
        %649 = vmatprep.subr.bf16.mxu0 0
        %650 = vmatpush1.bf16.xpose.msra.mxu0 %v647
        %651 = vmatprep.subr.bf16.mxu0 0
        %652 = vmatpush1.bf16.xpose.msra.mxu0 0
        %653 = vmatprep.subr.bf16.mxu0 0
        %654 = vmatpush1.bf16.xpose.msra.mxu0 0
        %655 = vmatprep.subr.bf16.mxu0 0
        %656 = vmatpush1.bf16.xpose.msra.mxu0 0
        %657 = vmatprep.subr.bf16.mxu0 0
        %658 = vmatpush1.bf16.xpose.msra.mxu0 0
        %659 = vmatprep.subr.bf16.mxu0 0
        %660 = vmatpush1.bf16.xpose.msra.mxu0 0
        %661 = vmatprep.subr.bf16.mxu0 0
        %662 = vmatpush1.bf16.xpose.msra.mxu0 0
        %663 = vmatprep.subr.bf16.mxu0 0
        %664 = vmatpush1.bf16.xpose.msra.mxu0 0
        %665 = vmatprep.subr.bf16.mxu0 0
        %666 = vmatpush1.bf16.xpose.msra.mxu0 0
        %667 = vmatprep.subr.bf16.mxu0 0
        %668 = vmatpush1.bf16.xpose.msra.mxu0 0
        %669 = vmatprep.subr.bf16.mxu0 0
        %670 = vmatpush1.bf16.xpose.msra.mxu0 0
        %671 = vmatprep.subr.bf16.mxu0 0
        %672 = vmatpush1.bf16.xpose.msra.mxu0 0
        %673 = vmatprep.subr.bf16.mxu0 0
        %674 = vmatpush1.bf16.xpose.msra.mxu0 0
        %675 = vmatprep.subr.bf16.mxu0 0
        %676 = vmatpush1.bf16.xpose.msra.mxu0 0
        %677 = vmatprep.subr.bf16.mxu0 0
        %678 = vmatpush1.bf16.xpose.msra.mxu0 0
        %679 = vmatprep.subr.bf16.mxu0 0
        %680 = vmatpush1.bf16.xpose.msra.mxu0 0
        %681 = vmatprep.mubr.bf16.mxu0 0
        %682 = vmatmul.mubr.bf16.gmra.mrb[0].mxu0 %v644
        %v683 = vpop.f32.mrb[0].mxu0
        %v684 = vadd.f32 0.0, %v683
        %v685 = vpop.f32.mrb[0].mxu0
        %v686 = vpop.f32.mrb[0].mxu0
        %v687 = vpop.f32.mrb[0].mxu0
        %688 = vdwg.mxu0
        %v689 = vsel %vm504, %v546, -inf
        %690 = vmax.xlane.f32.xlu0 %v689
        %v691 = vpop.xlane.xlu0 %690
        %v692 = vsel %vm504, %v592, -inf
        %693 = vmax.xlane.f32.xlu0 %v692
        %v694 = vpop.xlane.xlu0 %693
        %v695 = vsel %vm504, %v638, -inf
        %696 = vmax.xlane.f32.xlu0 %v695
        %v697 = vpop.xlane.xlu0 %696
        %v698 = vsel %vm504, %v684, -inf
        %699 = vmax.xlane.f32.xlu0 %v698
        %v700 = vpop.xlane.xlu0 %699
        %v701 = vsub.f32 %v546, %v691
        %v702 = vsub.f32 %v592, %v694
        %v703 = vsub.f32 %v638, %v697
        %v704 = vsub.f32 %v684, %v700
        %v705 = vpack.c.bf16 %v701, %v701
        %v706 = vpack.c.bf16 %v702, %v702
        %v707 = vpack.c.bf16 %v703, %v703
        %v708 = vpack.c.bf16 %v704, %v704
        %v710 = vmul.bf16 %v705, 1069105081
        %v711 = vpow.bf16.pop %v710
        %v713 = vmul.bf16 %v706, 1069105081
        %v714 = vpow.bf16.pop %v713
        %v716 = vmul.bf16 %v707, 1069105081
        %v717 = vpow.bf16.pop %v716
        %v719 = vmul.bf16 %v708, 1069105081
        %v720 = vpow.bf16.pop %v719
        %v721 = vunpack.c.l.bf16 %v711
        %v722 = vunpack.c.l.bf16 %v714
        %v723 = vunpack.c.l.bf16 %v717
        %v724 = vunpack.c.l.bf16 %v720
        %v725 = vsel %vm504, %v721, 0.0
        %726 = vadd.xlane.f32.xlu0 %v725
        %v727 = vpop.xlane.xlu0 %726
        %v728 = vsel %vm504, %v722, 0.0
        %729 = vadd.xlane.f32.xlu0 %v728
        %v730 = vpop.xlane.xlu0 %729
        %v731 = vsel %vm504, %v723, 0.0
        %732 = vadd.xlane.f32.xlu0 %v731
        %v733 = vpop.xlane.xlu0 %732
        %v734 = vsel %vm504, %v724, 0.0
        %735 = vadd.xlane.f32.xlu0 %v734
        %v736 = vpop.xlane.xlu0 %735
        %v737 = vrcp.pop %v727
        %v738 = vrcp.pop %v730
        %v739 = vrcp.pop %v733
        %v740 = vrcp.pop %v736
        %v741 = vpack.c.bf16 %v737, %v737
        %v742 = vpack.c.bf16 %v738, %v738
        %v743 = vpack.c.bf16 %v739, %v739
        %v744 = vpack.c.bf16 %v740, %v740
        %v745 = vmul.bf16 %v711, %v741
        %v746 = vmul.bf16 %v714, %v742
        %v747 = vmul.bf16 %v717, %v743
        %v748 = vmul.bf16 %v720, %v744
        %v749 = vld [vmem:[#allocation4] sm:$0xf]
        %v750 = vld [vmem:[#allocation4 + $0x4] sm:$0xf]
        %v751 = vld [vmem:[#allocation4 + $0x8] sm:$0xf]
        %v752 = vld [vmem:[#allocation4 + $0xc] sm:$0xf]
        %v754 = vsel %vm504, %v745, 0
        %vm756 = vcmask 1043456
        %v758 = vsel %vm756, %v749, 0
        %760 = vmatprep.subr.bf16.mxu0 0
        %761 = vmatpush1.bf16.msra.mxu0 %v758
        %762 = vmatprep.subr.bf16.mxu0 0
        %763 = vmatpush1.bf16.msra.mxu0 0
        %764 = vmatprep.subr.bf16.mxu0 0
        %765 = vmatpush1.bf16.msra.mxu0 0
        %766 = vmatprep.subr.bf16.mxu0 0
        %767 = vmatpush1.bf16.msra.mxu0 0
        %768 = vmatprep.subr.bf16.mxu0 0
        %769 = vmatpush1.bf16.msra.mxu0 0
        %770 = vmatprep.subr.bf16.mxu0 0
        %771 = vmatpush1.bf16.msra.mxu0 0
        %772 = vmatprep.subr.bf16.mxu0 0
        %773 = vmatpush1.bf16.msra.mxu0 0
        %774 = vmatprep.subr.bf16.mxu0 0
        %775 = vmatpush1.bf16.msra.mxu0 0
        %776 = vmatprep.subr.bf16.mxu0 0
        %777 = vmatpush1.bf16.msra.mxu0 0
        %778 = vmatprep.subr.bf16.mxu0 0
        %779 = vmatpush1.bf16.msra.mxu0 0
        %780 = vmatprep.subr.bf16.mxu0 0
        %781 = vmatpush1.bf16.msra.mxu0 0
        %782 = vmatprep.subr.bf16.mxu0 0
        %783 = vmatpush1.bf16.msra.mxu0 0
        %784 = vmatprep.subr.bf16.mxu0 0
        %785 = vmatpush1.bf16.msra.mxu0 0
        %786 = vmatprep.subr.bf16.mxu0 0
        %787 = vmatpush1.bf16.msra.mxu0 0
        %788 = vmatprep.subr.bf16.mxu0 0
        %789 = vmatpush1.bf16.msra.mxu0 0
        %790 = vmatprep.subr.bf16.mxu0 0
        %791 = vmatpush1.bf16.msra.mxu0 0
        %792 = vmatprep.mubr.bf16.mxu0 0
        %793 = vmatmul.mubr.bf16.gmra.mrb[0].mxu0 %v754
        %v794 = vpop.f32.mrb[0].mxu0
        %v795 = vadd.f32 0.0, %v794
        %v796 = vpop.f32.mrb[0].mxu0
        %v797 = vpop.f32.mrb[0].mxu0
        %v798 = vpop.f32.mrb[0].mxu0
        %799 = vdwg.mxu0
        %v801 = vsel %vm504, %v746, 0
        %v804 = vsel %vm756, %v750, 0
        %806 = vmatprep.subr.bf16.mxu0 0
        %807 = vmatpush1.bf16.msra.mxu0 %v804
        %808 = vmatprep.subr.bf16.mxu0 0
        %809 = vmatpush1.bf16.msra.mxu0 0
        %810 = vmatprep.subr.bf16.mxu0 0
        %811 = vmatpush1.bf16.msra.mxu0 0
        %812 = vmatprep.subr.bf16.mxu0 0
        %813 = vmatpush1.bf16.msra.mxu0 0
        %814 = vmatprep.subr.bf16.mxu0 0
        %815 = vmatpush1.bf16.msra.mxu0 0
        %816 = vmatprep.subr.bf16.mxu0 0
        %817 = vmatpush1.bf16.msra.mxu0 0
        %818 = vmatprep.subr.bf16.mxu0 0
        %819 = vmatpush1.bf16.msra.mxu0 0
        %820 = vmatprep.subr.bf16.mxu0 0
        %821 = vmatpush1.bf16.msra.mxu0 0
        %822 = vmatprep.subr.bf16.mxu0 0
        %823 = vmatpush1.bf16.msra.mxu0 0
        %824 = vmatprep.subr.bf16.mxu0 0
        %825 = vmatpush1.bf16.msra.mxu0 0
        %826 = vmatprep.subr.bf16.mxu0 0
        %827 = vmatpush1.bf16.msra.mxu0 0
        %828 = vmatprep.subr.bf16.mxu0 0
        %829 = vmatpush1.bf16.msra.mxu0 0
        %830 = vmatprep.subr.bf16.mxu0 0
        %831 = vmatpush1.bf16.msra.mxu0 0
        %832 = vmatprep.subr.bf16.mxu0 0
        %833 = vmatpush1.bf16.msra.mxu0 0
        %834 = vmatprep.subr.bf16.mxu0 0
        %835 = vmatpush1.bf16.msra.mxu0 0
        %836 = vmatprep.subr.bf16.mxu0 0
        %837 = vmatpush1.bf16.msra.mxu0 0
        %838 = vmatprep.mubr.bf16.mxu0 0
        %839 = vmatmul.mubr.bf16.gmra.mrb[0].mxu0 %v801
        %v840 = vpop.f32.mrb[0].mxu0
        %v841 = vadd.f32 0.0, %v840
        %v842 = vpop.f32.mrb[0].mxu0
        %v843 = vpop.f32.mrb[0].mxu0
        %v844 = vpop.f32.mrb[0].mxu0
        %845 = vdwg.mxu0
        %v847 = vsel %vm504, %v747, 0
        %v850 = vsel %vm756, %v751, 0
        %852 = vmatprep.subr.bf16.mxu0 0
        %853 = vmatpush1.bf16.msra.mxu0 %v850
        %854 = vmatprep.subr.bf16.mxu0 0
        %855 = vmatpush1.bf16.msra.mxu0 0
        %856 = vmatprep.subr.bf16.mxu0 0
        %857 = vmatpush1.bf16.msra.mxu0 0
        %858 = vmatprep.subr.bf16.mxu0 0
        %859 = vmatpush1.bf16.msra.mxu0 0
        %860 = vmatprep.subr.bf16.mxu0 0
        %861 = vmatpush1.bf16.msra.mxu0 0
        %862 = vmatprep.subr.bf16.mxu0 0
        %863 = vmatpush1.bf16.msra.mxu0 0
        %864 = vmatprep.subr.bf16.mxu0 0
        %865 = vmatpush1.bf16.msra.mxu0 0
        %866 = vmatprep.subr.bf16.mxu0 0
        %867 = vmatpush1.bf16.msra.mxu0 0
        %868 = vmatprep.subr.bf16.mxu0 0
        %869 = vmatpush1.bf16.msra.mxu0 0
        %870 = vmatprep.subr.bf16.mxu0 0
        %871 = vmatpush1.bf16.msra.mxu0 0
        %872 = vmatprep.subr.bf16.mxu0 0
        %873 = vmatpush1.bf16.msra.mxu0 0
        %874 = vmatprep.subr.bf16.mxu0 0
        %875 = vmatpush1.bf16.msra.mxu0 0
        %876 = vmatprep.subr.bf16.mxu0 0
        %877 = vmatpush1.bf16.msra.mxu0 0
        %878 = vmatprep.subr.bf16.mxu0 0
        %879 = vmatpush1.bf16.msra.mxu0 0
        %880 = vmatprep.subr.bf16.mxu0 0
        %881 = vmatpush1.bf16.msra.mxu0 0
        %882 = vmatprep.subr.bf16.mxu0 0
        %883 = vmatpush1.bf16.msra.mxu0 0
        %884 = vmatprep.mubr.bf16.mxu0 0
        %885 = vmatmul.mubr.bf16.gmra.mrb[0].mxu0 %v847
        %v886 = vpop.f32.mrb[0].mxu0
        %v887 = vadd.f32 0.0, %v886
        %v888 = vpop.f32.mrb[0].mxu0
        %v889 = vpop.f32.mrb[0].mxu0
        %v890 = vpop.f32.mrb[0].mxu0
        %891 = vdwg.mxu0
        %v893 = vsel %vm504, %v748, 0
        %v896 = vsel %vm756, %v752, 0
        %898 = vmatprep.subr.bf16.mxu0 0
        %899 = vmatpush1.bf16.msra.mxu0 %v896
        %900 = vmatprep.subr.bf16.mxu0 0
        %901 = vmatpush1.bf16.msra.mxu0 0
        %902 = vmatprep.subr.bf16.mxu0 0
        %903 = vmatpush1.bf16.msra.mxu0 0
        %904 = vmatprep.subr.bf16.mxu0 0
        %905 = vmatpush1.bf16.msra.mxu0 0
        %906 = vmatprep.subr.bf16.mxu0 0
        %907 = vmatpush1.bf16.msra.mxu0 0
        %908 = vmatprep.subr.bf16.mxu0 0
        %909 = vmatpush1.bf16.msra.mxu0 0
        %910 = vmatprep.subr.bf16.mxu0 0
        %911 = vmatpush1.bf16.msra.mxu0 0
        %912 = vmatprep.subr.bf16.mxu0 0
        %913 = vmatpush1.bf16.msra.mxu0 0
        %914 = vmatprep.subr.bf16.mxu0 0
        %915 = vmatpush1.bf16.msra.mxu0 0
        %916 = vmatprep.subr.bf16.mxu0 0
        %917 = vmatpush1.bf16.msra.mxu0 0
        %918 = vmatprep.subr.bf16.mxu0 0
        %919 = vmatpush1.bf16.msra.mxu0 0
        %920 = vmatprep.subr.bf16.mxu0 0
        %921 = vmatpush1.bf16.msra.mxu0 0
        %922 = vmatprep.subr.bf16.mxu0 0
        %923 = vmatpush1.bf16.msra.mxu0 0
        %924 = vmatprep.subr.bf16.mxu0 0
        %925 = vmatpush1.bf16.msra.mxu0 0
        %926 = vmatprep.subr.bf16.mxu0 0
        %927 = vmatpush1.bf16.msra.mxu0 0
        %928 = vmatprep.subr.bf16.mxu0 0
        %929 = vmatpush1.bf16.msra.mxu0 0
        %930 = vmatprep.mubr.bf16.mxu0 0
        %931 = vmatmul.mubr.bf16.gmra.mrb[0].mxu0 %v893
        %v932 = vpop.f32.mrb[0].mxu0
        %v933 = vadd.f32 0.0, %v932
        %v934 = vpop.f32.mrb[0].mxu0
        %v935 = vpop.f32.mrb[0].mxu0
        %v936 = vpop.f32.mrb[0].mxu0
        %937 = vdwg.mxu0
        %v938 = vpack.c.bf16 %v795, %v795
        %939 = vst.msk [vmem:[#allocation5] sm:$0xf] %vm476, %v938
        %v940 = vpack.c.bf16 %v841, %v841
        %v942 = vunpack.c.l.b16 %v940
        %v943 = vpack.c.b16 %v942, %v942
        %944 = vrot.lane.b32.xlu0 %v943, 8
        %v945 = vpop.permute.xlu0 %944
        %vm947 = vcmask 126016
        %948 = vst.msk [vmem:[#allocation5] sm:$0xf] %vm947, %v945
        %v949 = vpack.c.bf16 %v887, %v887
        %v951 = vunpack.c.l.b16 %v949
        %v952 = vpack.c.b16 %v951, %v951
        %953 = vrot.lane.b32.xlu0 %v952, 16
        %v954 = vpop.permute.xlu0 %953
        %vm956 = vcmask 191616
        %957 = vst.msk [vmem:[#allocation5] sm:$0xf] %vm956, %v954
        %v958 = vpack.c.bf16 %v933, %v933
        %v960 = vunpack.c.l.b16 %v958
        %v961 = vpack.c.b16 %v960, %v960
        %962 = vrot.lane.b32.xlu0 %v961, 24
        %v963 = vpop.permute.xlu0 %962
        %vm965 = vcmask 257216
        %966 = vst.msk [vmem:[#allocation5] sm:$0xf] %vm965, %v963
        %v967 = vld [vmem:[#allocation5] sm:$0xf]
        %v968 = vld [vmem:[#allocation11] sm:$0xf]
        %v969 = vld [vmem:[#allocation11 + $0x4] sm:$0xf]
        %v970 = vld [vmem:[#allocation11 + $0x8] sm:$0xf]
        %v971 = vld [vmem:[#allocation11 + $0xc] sm:$0xf]
        %v972 = vld [vmem:[%s4] sm:$0x1]
        %v974 = vlaneseq
        %v975 = vshrl.u32 %v974, 7
        %v976 = vsub.s32 0, %v975
        %v977 = vrot.slane %v972, %v976
        %v983 = vunpack.c.l.b16 %v968
        %v984 = vunpack.c.l.b16 %v969
        %v985 = vunpack.c.l.b16 %v970
        %v986 = vunpack.c.l.b16 %v971
        %v987 = vpack.c.b16 %v984, %v983
        %v988 = vpack.c.b16 %v986, %v985
        %v992 = vsel %vm431, %v967, 0
        %994 = vmatprep.subr.bf16.mxu0 0
        %995 = vmatpush1.bf16.msra.mxu0 %v987
        %996 = vmatprep.subr.bf16.mxu0 0
        %997 = vmatpush1.bf16.msra.mxu0 %v988
        %998 = vmatprep.subr.bf16.mxu0 0
        %999 = vmatpush1.bf16.msra.mxu0 0
        %1000 = vmatprep.subr.bf16.mxu0 0
        %1001 = vmatpush1.bf16.msra.mxu0 0
        %1002 = vmatprep.subr.bf16.mxu0 0
        %1003 = vmatpush1.bf16.msra.mxu0 0
        %1004 = vmatprep.subr.bf16.mxu0 0
        %1005 = vmatpush1.bf16.msra.mxu0 0
        %1006 = vmatprep.subr.bf16.mxu0 0
        %1007 = vmatpush1.bf16.msra.mxu0 0
        %1008 = vmatprep.subr.bf16.mxu0 0
        %1009 = vmatpush1.bf16.msra.mxu0 0
        %1010 = vmatprep.subr.bf16.mxu0 0
        %1011 = vmatpush1.bf16.msra.mxu0 0
        %1012 = vmatprep.subr.bf16.mxu0 0
        %1013 = vmatpush1.bf16.msra.mxu0 0
        %1014 = vmatprep.subr.bf16.mxu0 0
        %1015 = vmatpush1.bf16.msra.mxu0 0
        %1016 = vmatprep.subr.bf16.mxu0 0
        %1017 = vmatpush1.bf16.msra.mxu0 0
        %1018 = vmatprep.subr.bf16.mxu0 0
        %1019 = vmatpush1.bf16.msra.mxu0 0
        %1020 = vmatprep.subr.bf16.mxu0 0
        %1021 = vmatpush1.bf16.msra.mxu0 0
        %1022 = vmatprep.subr.bf16.mxu0 0
        %1023 = vmatpush1.bf16.msra.mxu0 0
        %1024 = vmatprep.subr.bf16.mxu0 0
        %1025 = vmatpush1.bf16.msra.mxu0 0
        %1026 = vmatprep.mubr.bf16.mxu0 0
        %1027 = vmatmul.mubr.bf16.gmra.mrb[0].mxu0 %v992
        %v1028 = vpop.f32.mrb[0].mxu0
        %v1029 = vadd.f32 %v977, %v1028
        %v1030 = vpop.f32.mrb[0].mxu0
        %v1031 = vpop.f32.mrb[0].mxu0
        %v1032 = vpop.f32.mrb[0].mxu0
        %1033 = vdwg.mxu0
        %1034 = vst.msk [vmem:[%s282] sm:$0xff] %vm431, %v1029
        %s1035 = sand.u32 %s155, 1
        %s1036 = scalar_lea.sflag [#allocation8], %s1035
        %s1037 = sand.u32 %s155, 1
        %s1038 = smul.addr %s1037, 8
        %s1039 = scalar_lea.vmem [#allocation12], %s1038
        // Predicated region
        $region57: #{tpu_custom_call.1} parent=39 // pred_check
          %p1040 = pneg %p165
        $region58: #{tpu_custom_call.1} parent=39 // pred_check_branch
          %1042 = sbr.rel (%p1040) target = $region60
        $region59: #{tpu_custom_call.1} parent=39 // pred_region
          %s1044 = ssub.s32 128, 128
          %1045 = vsyncadd %s1036, %s1044
          %s1046 = sadd.s32 %s28, %s27
          %s1047 = smul.addr %s1046, 128
          %s1048 = scalar_lea.hbm %s5, %s1047
          %s1050 = sshll.u32 %s1039, 4
          %s1051 = int_to_ptr.vmem [resolvable:$true] %s1050
          %1053 = dma.vmem_to_hbm [thread:$0]  %s1051, 128, %s1048, %s1036
        $region60: #{tpu_custom_call.1} parent=39 // pred_fallthru
          _
      $region40: #{tpu_custom_call.1} parent=5 // pred_fallthru
        _
      %p1054 = scmp.le.s32.totalorder 2, %s18
      // Predicated region
      $region61: #{tpu_custom_call.1} parent=5 // pred_check
        %p1055 = pneg %p1054
      $region62: #{tpu_custom_call.1} parent=5 // pred_check_branch
        %1057 = sbr.rel (%p1055) target = $region64
      $region63: #{tpu_custom_call.1} parent=5 // pred_region
        %s1058 = ssub.s32 %s18, 2
        // Predicated region
        $region65: #{tpu_custom_call.1} parent=63 // pred_check
          %p1059 = pneg %p171
        $region66: #{tpu_custom_call.1} parent=63 // pred_check_branch
          %1061 = sbr.rel (%p1059) target = $region68
        $region67: #{tpu_custom_call.1} parent=63 // pred_region
          %s1062 = sand.u32 %s156, 1
          %s1063 = scalar_lea.sflag [#allocation8], %s1062
          %s1064 = sand.u32 %s156, 1
          %s1065 = smul.addr %s1064, 8
          %s1066 = scalar_lea.vmem [#allocation12], %s1065
          %1067 = dma.done %s1063, 128
        $region68: #{tpu_custom_call.1} parent=63 // pred_fallthru
          _
      $region64: #{tpu_custom_call.1} parent=5 // pred_fallthru
        _
    $region6: #{tpu_custom_call.1} parent=1 // loop_footer
      %s22 = sadd.s32 1, %s18
    $region7: #{tpu_custom_call.1} parent=1 // loop_footer_branch
      %17 = sbr.rel target = $region3
    $region8: #{tpu_custom_call.1} parent=1 // loop_exit
      _
    %1068 = vsyncpa [#allocation7], 1
    %s1069 = scalar_lea.sflag [#allocation7], 1
    %1070 = vsyncpa %s1069, 1
    %1071 = vsyncpa [#allocation10], 1
    %1072 = vsyncpa [#allocation8], 1
    %s1073 = scalar_lea.sflag [#allocation8], 1
    %1074 = vsyncpa %s1073, 1

</llo_original>
